<compile_context>
chip_gen: v5e
topology: v5e:2x2
jax: 0.10.0
libtpu: 0.0.40
codegen_flags: <defaults>
</compile_context>

<pallas_src>
import functools

import numpy as np
import jax
import jax.numpy as jnp
from jax.experimental import pallas as pl
from jax.experimental.pallas import tpu as pltpu


# ----------------------------------------------------------------------------
# Geometry of the flat padded-image scratch (row pitch W+2).
# ----------------------------------------------------------------------------
def _flat_geom(H, W):
    left = W + 3                       # flat index of image pixel (0, 0)
    body = H * (W + 2)                 # length of the computed/stored slab
    need = body + 2 * (W + 2) + 2      # furthest lane any conv tap reads
    wf = ((max(left + body, need) + 127) // 128) * 128
    return left, body, wf


def _valid_mask(H, W):
    """1.0 on real pixels, 0.0 on the 2 junk columns per row of the flat slab."""
    _, body, _ = _flat_geom(H, W)
    cols = np.arange(body) % (W + 2)
    return jnp.asarray((cols < W).astype(np.float32).reshape(1, body))


def _conv_taps(flat_ref, w_ref, b_ref, Cout, W, body):
    """3x3 conv as 9 accumulated MXU matmuls over lane-shifted scratch slices."""
    acc = jnp.zeros((Cout, body), jnp.float32)
    for k in range(9):
        dy, dx = k // 3, k % 3
        off = dy * (W + 2) + dx
        acc = acc + jnp.dot(w_ref[k], flat_ref[:, pl.ds(off, body)],
                            preferred_element_type=jnp.float32)
    return acc + b_ref[...]


# ----------------------------------------------------------------------------
# Kernel A: conv1 from NCHW input + BN training-stat partials.
# ----------------------------------------------------------------------------
def _conv1_kernel(H, W, Cin, Cout,
                  x_ref, w_ref, b_ref, mask_ref,
                  y_ref, sum_ref, ssq_ref,
                  flat_ref):
    left, body, wf = _flat_geom(H, W)
    # Zero only the halo strips; the body below is fully rewritten every step.
    flat_ref[:, pl.ds(0, left)] = jnp.zeros((Cin, left), jnp.float32)
    flat_ref[:, pl.ds(left + body, wf - left - body)] = jnp.zeros(
        (Cin, wf - left - body), jnp.float32)
    # Place image rows at pitch W+2; the two appended zero columns double as the
    # left/right zero padding of the 3x3 conv.
    x = x_ref[0].astype(jnp.float32)                                 # (Cin,H,W)
    xz = jnp.concatenate([x, jnp.zeros((Cin, H, 2), jnp.float32)], axis=-1)
    flat_ref[:, pl.ds(left, body)] = xz.reshape(Cin, body)

    acc = _conv_taps(flat_ref, w_ref, b_ref, Cout, W, body)         # (Cout,body)
    acc = acc * mask_ref[...]                                        # zero junk cols
    y_ref[0] = acc.astype(y_ref.dtype)                               # bf16, lane-dense
    sum_ref[0] = jnp.sum(acc, axis=1, keepdims=True)                 # f32 BN partials
    ssq_ref[0] = jnp.sum(acc * acc, axis=1, keepdims=True)


def conv1(x_nchw, w_taps, bias, mask):
    N, Cin, H, W = x_nchw.shape
    Cout = w_taps.shape[1]
    _, body, wf = _flat_geom(H, W)
    kernel = functools.partial(_conv1_kernel, H, W, Cin, Cout)
    return pl.pallas_call(
        kernel,
        out_shape=(jax.ShapeDtypeStruct((N, Cout, body), jnp.bfloat16),
                   jax.ShapeDtypeStruct((N, Cout, 1), jnp.float32),
                   jax.ShapeDtypeStruct((N, Cout, 1), jnp.float32)),
        grid=(N,),
        in_specs=[
            pl.BlockSpec((1, Cin, H, W), lambda n: (n, 0, 0, 0)),
            pl.BlockSpec((9, Cout, Cin), lambda n: (0, 0, 0)),
            pl.BlockSpec((Cout, 1), lambda n: (0, 0)),
            pl.BlockSpec((1, body), lambda n: (0, 0)),
        ],
        out_specs=(
            pl.BlockSpec((1, Cout, body), lambda n: (n, 0, 0)),
            pl.BlockSpec((1, Cout, 1), lambda n: (n, 0, 0)),
            pl.BlockSpec((1, Cout, 1), lambda n: (n, 0, 0)),
        ),
        scratch_shapes=[pltpu.VMEM((Cin, wf), jnp.float32)],
        compiler_params=pltpu.CompilerParams(
            dimension_semantics=("parallel",)),
    )(x_nchw, w_taps, bias, mask)


# ----------------------------------------------------------------------------
# Kernel B: conv2 with layer-1 BN affine + ReLU fused into the input read.
# ----------------------------------------------------------------------------
def _conv2_kernel(H, W, C, Cout,
                  y1_ref, w_ref, b_ref, s_ref, t_ref, mask_ref,
                  y_ref, sum_ref, ssq_ref,
                  flat_ref):
    left, body, wf = _flat_geom(H, W)
    flat_ref[:, pl.ds(0, left)] = jnp.zeros((C, left), jnp.float32)
    flat_ref[:, pl.ds(left + body, wf - left - body)] = jnp.zeros(
        (C, wf - left - body), jnp.float32)
    # Fused BN1 affine + ReLU on the bf16 input; junk columns are masked to zero
    # so they double as the conv's zero padding.  a1 never round-trips HBM.
    a1 = jnp.maximum(y1_ref[0].astype(jnp.float32) * s_ref[...] + t_ref[...], 0.0)
    flat_ref[:, pl.ds(left, body)] = a1 * mask_ref[...]

    acc = _conv_taps(flat_ref, w_ref, b_ref, Cout, W, body)
    acc = acc * mask_ref[...]
    y_ref[0] = acc.astype(y_ref.dtype)
    sum_ref[0] = jnp.sum(acc, axis=1, keepdims=True)
    ssq_ref[0] = jnp.sum(acc * acc, axis=1, keepdims=True)


def conv2(y1, w_taps, bias, scale, shift, mask, H, W):
    N, C, body = y1.shape
    Cout = w_taps.shape[1]
    _, _, wf = _flat_geom(H, W)
    kernel = functools.partial(_conv2_kernel, H, W, C, Cout)
    return pl.pallas_call(
        kernel,
        out_shape=(jax.ShapeDtypeStruct((N, Cout, body), jnp.bfloat16),
                   jax.ShapeDtypeStruct((N, Cout, 1), jnp.float32),
                   jax.ShapeDtypeStruct((N, Cout, 1), jnp.float32)),
        grid=(N,),
        in_specs=[
            pl.BlockSpec((1, C, body), lambda n: (n, 0, 0)),
            pl.BlockSpec((9, Cout, C), lambda n: (0, 0, 0)),
            pl.BlockSpec((Cout, 1), lambda n: (0, 0)),
            pl.BlockSpec((C, 1), lambda n: (0, 0)),
            pl.BlockSpec((C, 1), lambda n: (0, 0)),
            pl.BlockSpec((1, body), lambda n: (0, 0)),
        ],
        out_specs=(
            pl.BlockSpec((1, Cout, body), lambda n: (n, 0, 0)),
            pl.BlockSpec((1, Cout, 1), lambda n: (n, 0, 0)),
            pl.BlockSpec((1, Cout, 1), lambda n: (n, 0, 0)),
        ),
        scratch_shapes=[pltpu.VMEM((C, wf), jnp.float32)],
        compiler_params=pltpu.CompilerParams(
            dimension_semantics=("parallel",)),
    )(y1, w_taps, bias, scale, shift, mask)


# ----------------------------------------------------------------------------
# Kernel C: folded-BN affine + ReLU + MaxPool(2,2), written NCHW-compatible.
# ----------------------------------------------------------------------------
def _bnrelu_pool_kernel(H, W, C, y_ref, s_ref, t_ref, o_ref):
    a = jnp.maximum(y_ref[0].astype(jnp.float32) * s_ref[...] + t_ref[...], 0.0)
    a = a.reshape(C, H, W + 2)[:, :, :W]                      # drop junk columns
    a = jnp.max(a.reshape(C, H, W // 2, 2), axis=3)
    a = jnp.max(a.reshape(C, H // 2, 2, W // 2), axis=2)
    o_ref[0] = a.reshape(C, (H // 2) * (W // 2))


def bnrelu_pool(y2, scale, shift, H, W):
    N, C, body = y2.shape
    hw = (H // 2) * (W // 2)
    kernel = functools.partial(_bnrelu_pool_kernel, H, W, C)
    return pl.pallas_call(
        kernel,
        out_shape=jax.ShapeDtypeStruct((N, C, hw), jnp.float32),
        grid=(N,),
        in_specs=[
            pl.BlockSpec((1, C, body), lambda n: (n, 0, 0)),
            pl.BlockSpec((C, 1), lambda n: (0, 0)),
            pl.BlockSpec((C, 1), lambda n: (0, 0)),
        ],
        out_specs=pl.BlockSpec((1, C, hw), lambda n: (n, 0, 0)),
        compiler_params=pltpu.CompilerParams(
            dimension_semantics=("parallel",)),
    )(y2, scale, shift)


# ----------------------------------------------------------------------------
# Glue: per-image channel partials -> training-mode BN scale/shift (O(N*C)).
# ----------------------------------------------------------------------------
def bn_affine_from_partials(psum, pssq, gamma, beta, count, eps=1e-5):
    mean = jnp.sum(psum, axis=0)[:, 0] / count
    ex2 = jnp.sum(pssq, axis=0)[:, 0] / count
    var = jnp.maximum(ex2 - mean * mean, 0.0)     # biased variance, as PyTorch
    scale = gamma / jnp.sqrt(var + eps)
    shift = beta - mean * scale
    return (scale.reshape(-1, 1).astype(jnp.float32),
            shift.reshape(-1, 1).astype(jnp.float32))


def _oihw_to_taps(w_oihw):
    Cout, Cin = w_oihw.shape[0], w_oihw.shape[1]
    # (Cout, Cin, 3, 3) -> (9, Cout, Cin), tap k = dy*3 + dx
    return jnp.transpose(w_oihw, (2, 3, 0, 1)).reshape(9, Cout, Cin).astype(jnp.float32)


def conv_dn_forward(x_nchw, p):
    """ConvDn.forward: ConvBlock -> ConvBlock -> MaxPool2d(2,2).  NCHW in/out."""
    N, Cin, H, W = x_nchw.shape
    Cout = p["w1"].shape[0]
    mask = _valid_mask(H, W)
    x = x_nchw.astype(jnp.float32)

    w1 = _oihw_to_taps(p["w1"])
    b1 = p["b1"].reshape(-1, 1).astype(jnp.float32)
    w2 = _oihw_to_taps(p["w2"])
    b2 = p["b2"].reshape(-1, 1).astype(jnp.float32)

    # conv1 (+ BN stat partials)
    y1, s1, q1 = conv1(x, w1, b1, mask)
    sc1, sh1 = bn_affine_from_partials(s1, q1, p["g1"], p["beta1"], N * H * W)

    # conv2 with layer-1 BN affine + ReLU fused into the input read
    y2, s2, q2 = conv2(y1, w2, b2, sc1, sh1, mask, H, W)
    sc2, sh2 = bn_affine_from_partials(s2, q2, p["g2"], p["beta2"], N * H * W)

    out = bnrelu_pool(y2, sc2, sh2, H, W)
    return out.reshape(N, Cout, H // 2, W // 2)      # contiguous, free reshape


# ----------------------------------------------------------------------------
# Pure-JAX reference (same semantics) for a correctness check.
# ----------------------------------------------------------------------------
def _reference(x_nchw, p):
    def conv(x, w, b):
        y = jax.lax.conv_general_dilated(
            x, w, window_strides=(1, 1), padding=((1, 1), (1, 1)),
            dimension_numbers=("NCHW", "OIHW", "NCHW"),
            precision=jax.lax.Precision.HIGHEST)
        return y + b[None, :, None, None]

    def bn_relu(y, g, be):
        mean = y.mean(axis=(0, 2, 3), keepdims=True)
        var = jnp.square(y - mean).mean(axis=(0, 2, 3), keepdims=True)
        yhat = (y - mean) / jnp.sqrt(var + 1e-5)
        return jnp.maximum(yhat * g[None, :, None, None]
                           + be[None, :, None, None], 0.0)

    a1 = bn_relu(conv(x_nchw, p["w1"], p["b1"]), p["g1"], p["beta1"])
    a2 = bn_relu(conv(a1, p["w2"], p["b2"]), p["g2"], p["beta2"])
    return jax.lax.reduce_window(a2, -jnp.inf, jax.lax.max,
                                 (1, 1, 2, 2), (1, 1, 2, 2), "VALID")


if __name__ == "__main__":
    N, Cin, Cout, H, W = 2, 4, 8, 16, 16

    key = jax.random.PRNGKey(0)
    ks = jax.random.split(key, 9)
    params = {
        "w1": 0.2 * jax.random.normal(ks[0], (Cout, Cin, 3, 3), jnp.float32),
        "b1": 0.1 * jax.random.normal(ks[1], (Cout,), jnp.float32),
        "g1": 1.0 + 0.1 * jax.random.normal(ks[2], (Cout,), jnp.float32),
        "beta1": 0.1 * jax.random.normal(ks[3], (Cout,), jnp.float32),
        "w2": 0.2 * jax.random.normal(ks[4], (Cout, Cout, 3, 3), jnp.float32),
        "b2": 0.1 * jax.random.normal(ks[5], (Cout,), jnp.float32),
        "g2": 1.0 + 0.1 * jax.random.normal(ks[6], (Cout,), jnp.float32),
        "beta2": 0.1 * jax.random.normal(ks[7], (Cout,), jnp.float32),
    }
    x = jax.random.normal(ks[8], (N, Cin, H, W), jnp.float32)

    out = jax.block_until_ready(conv_dn_forward(x, params))
    assert out.shape == (N, Cout, H // 2, W // 2), out.shape

    ref = jax.block_until_ready(_reference(x, params))
    assert jnp.allclose(out, ref, atol=5e-2, rtol=5e-2), (
        float(jnp.max(jnp.abs(out - ref))))

    print("KERNEL_OK")
</pallas_src>

<mosaic_0001>
module attributes {stable_mosaic.version = 11 : i64} {
  func.func @_conv1_kernel(%arg0: i32, %arg1: memref<1x4x16x16xf32, #tpu.memory_space<vmem>>, %arg2: memref<9x8x4xf32, #tpu.memory_space<vmem>>, %arg3: memref<8x1xf32, #tpu.memory_space<vmem>>, %arg4: memref<1x288xf32, #tpu.memory_space<vmem>>, %arg5: memref<1x8x288xbf16, #tpu.memory_space<vmem>>, %arg6: memref<1x8x1xf32, #tpu.memory_space<vmem>>, %arg7: memref<1x8x1xf32, #tpu.memory_space<vmem>>, %arg8: memref<4x384xf32, #tpu.memory_space<vmem>>) attributes {dimension_semantics = [#tpu.dimension_semantics<parallel>], iteration_bounds = array<i64: 2>, scalar_prefetch = 0 : i64, scratch_operands = 1 : i64, tpu.core_type = #tpu.core_type<tc>, window_params = [{transform_indices = @transform_0, window_bounds = array<i64: 1, 4, 16, 16>}, {pipeline_mode = #tpu.pipeline_mode<synchronous>, transform_indices = @transform_1, window_bounds = array<i64: 9, 8, 4>}, {pipeline_mode = #tpu.pipeline_mode<synchronous>, transform_indices = @transform_2, window_bounds = array<i64: 8, 1>}, {pipeline_mode = #tpu.pipeline_mode<synchronous>, transform_indices = @transform_3, window_bounds = array<i64: 1, 288>}, {transform_indices = @transform_4, window_bounds = array<i64: 1, 8, 288>}, {transform_indices = @transform_5, window_bounds = array<i64: 1, 8, 1>}, {transform_indices = @transform_6, window_bounds = array<i64: 1, 8, 1>}]} {
    %cst = arith.constant 0.000000e+00 : f32
    %0 = vector.broadcast %cst : f32 to vector<4x19xf32>
    %c0 = arith.constant 0 : index
    %c0_0 = arith.constant 0 : index
    %1 = vector.load %arg8[%c0, %c0_0] : memref<4x384xf32, #tpu.memory_space<vmem>>, vector<4x19xf32>
    tpu.vector_store %arg8[%c0, %c0_0], %0 {strides = array<i32>} : memref<4x384xf32, #tpu.memory_space<vmem>>, vector<4x19xf32>,
    %cst_1 = arith.constant 0.000000e+00 : f32
    %2 = vector.broadcast %cst_1 : f32 to vector<4x77xf32>
    %c0_2 = arith.constant 0 : index
    %c307 = arith.constant 307 : index
    %3 = vector.load %arg8[%c0_2, %c307] : memref<4x384xf32, #tpu.memory_space<vmem>>, vector<4x77xf32>
    tpu.vector_store %arg8[%c0_2, %c307], %2 {strides = array<i32>} : memref<4x384xf32, #tpu.memory_space<vmem>>, vector<4x77xf32>,
    %c0_3 = arith.constant 0 : index
    %c0_4 = arith.constant 0 : index
    %c0_5 = arith.constant 0 : index
    %c0_6 = arith.constant 0 : index
    %4 = vector.load %arg1[%c0_3, %c0_4, %c0_5, %c0_6] : memref<1x4x16x16xf32, #tpu.memory_space<vmem>>, vector<1x4x16x16xf32>
    %5 = vector.shape_cast %4 : vector<1x4x16x16xf32> to vector<4x16x16xf32>
    %cst_7 = arith.constant 0.000000e+00 : f32
    %6 = vector.broadcast %cst_7 : f32 to vector<4x16x2xf32>
    %7 = tpu.concatenate %5, %6 in 2 : vector<4x16x16xf32>, vector<4x16x2xf32> -> vector<4x16x18xf32>
    %8 = vector.shape_cast %7 : vector<4x16x18xf32> to vector<4x288xf32>
    %c0_8 = arith.constant 0 : index
    %c19 = arith.constant 19 : index
    %9 = vector.load %arg8[%c0_8, %c19] : memref<4x384xf32, #tpu.memory_space<vmem>>, vector<4x288xf32>
    tpu.vector_store %arg8[%c0_8, %c19], %8 {strides = array<i32>} : memref<4x384xf32, #tpu.memory_space<vmem>>, vector<4x288xf32>,
    %cst_9 = arith.constant 0.000000e+00 : f32
    %10 = vector.broadcast %cst_9 : f32 to vector<8x288xf32>
    %c0_10 = arith.constant 0 : index
    %c0_11 = arith.constant 0 : index
    %c0_12 = arith.constant 0 : index
    %11 = vector.load %arg2[%c0_10, %c0_11, %c0_12] : memref<9x8x4xf32, #tpu.memory_space<vmem>>, vector<1x8x4xf32>
    %12 = vector.shape_cast %11 : vector<1x8x4xf32> to vector<8x4xf32>
    %c0_13 = arith.constant 0 : index
    %c0_14 = arith.constant 0 : index
    %13 = vector.load %arg8[%c0_13, %c0_14] : memref<4x384xf32, #tpu.memory_space<vmem>>, vector<4x288xf32>
    %cst_15 = arith.constant dense<0.000000e+00> : vector<8x288xf32>
    %14 = tpu.matmul %12, %13, %cst_15 {dimension_numbers = #tpu.dot_dimension_numbers<[1], [0], [0], [1], [0, 0, 1, 1], [], []>} : vector<8x4xf32>, vector<4x288xf32>, vector<8x288xf32> -> vector<8x288xf32>
    %15 = arith.addf %10, %14 : vector<8x288xf32>
    %c1 = arith.constant 1 : index
    %c0_16 = arith.constant 0 : index
    %c0_17 = arith.constant 0 : index
    %16 = vector.load %arg2[%c1, %c0_16, %c0_17] : memref<9x8x4xf32, #tpu.memory_space<vmem>>, vector<1x8x4xf32>
    %17 = vector.shape_cast %16 : vector<1x8x4xf32> to vector<8x4xf32>
    %c0_18 = arith.constant 0 : index
    %c1_19 = arith.constant 1 : index
    %18 = vector.load %arg8[%c0_18, %c1_19] : memref<4x384xf32, #tpu.memory_space<vmem>>, vector<4x288xf32>
    %cst_20 = arith.constant dense<0.000000e+00> : vector<8x288xf32>
    %19 = tpu.matmul %17, %18, %cst_20 {dimension_numbers = #tpu.dot_dimension_numbers<[1], [0], [0], [1], [0, 0, 1, 1], [], []>} : vector<8x4xf32>, vector<4x288xf32>, vector<8x288xf32> -> vector<8x288xf32>
    %20 = arith.addf %15, %19 : vector<8x288xf32>
    %c2 = arith.constant 2 : index
    %c0_21 = arith.constant 0 : index
    %c0_22 = arith.constant 0 : index
    %21 = vector.load %arg2[%c2, %c0_21, %c0_22] : memref<9x8x4xf32, #tpu.memory_space<vmem>>, vector<1x8x4xf32>
    %22 = vector.shape_cast %21 : vector<1x8x4xf32> to vector<8x4xf32>
    %c0_23 = arith.constant 0 : index
    %c2_24 = arith.constant 2 : index
    %23 = vector.load %arg8[%c0_23, %c2_24] : memref<4x384xf32, #tpu.memory_space<vmem>>, vector<4x288xf32>
    %cst_25 = arith.constant dense<0.000000e+00> : vector<8x288xf32>
    %24 = tpu.matmul %22, %23, %cst_25 {dimension_numbers = #tpu.dot_dimension_numbers<[1], [0], [0], [1], [0, 0, 1, 1], [], []>} : vector<8x4xf32>, vector<4x288xf32>, vector<8x288xf32> -> vector<8x288xf32>
    %25 = arith.addf %20, %24 : vector<8x288xf32>
    %c3 = arith.constant 3 : index
    %c0_26 = arith.constant 0 : index
    %c0_27 = arith.constant 0 : index
    %26 = vector.load %arg2[%c3, %c0_26, %c0_27] : memref<9x8x4xf32, #tpu.memory_space<vmem>>, vector<1x8x4xf32>
    %27 = vector.shape_cast %26 : vector<1x8x4xf32> to vector<8x4xf32>
    %c0_28 = arith.constant 0 : index
    %c18 = arith.constant 18 : index
    %28 = vector.load %arg8[%c0_28, %c18] : memref<4x384xf32, #tpu.memory_space<vmem>>, vector<4x288xf32>
    %cst_29 = arith.constant dense<0.000000e+00> : vector<8x288xf32>
    %29 = tpu.matmul %27, %28, %cst_29 {dimension_numbers = #tpu.dot_dimension_numbers<[1], [0], [0], [1], [0, 0, 1, 1], [], []>} : vector<8x4xf32>, vector<4x288xf32>, vector<8x288xf32> -> vector<8x288xf32>
    %30 = arith.addf %25, %29 : vector<8x288xf32>
    %c4 = arith.constant 4 : index
    %c0_30 = arith.constant 0 : index
    %c0_31 = arith.constant 0 : index
    %31 = vector.load %arg2[%c4, %c0_30, %c0_31] : memref<9x8x4xf32, #tpu.memory_space<vmem>>, vector<1x8x4xf32>
    %32 = vector.shape_cast %31 : vector<1x8x4xf32> to vector<8x4xf32>
    %c0_32 = arith.constant 0 : index
    %c19_33 = arith.constant 19 : index
    %33 = vector.load %arg8[%c0_32, %c19_33] : memref<4x384xf32, #tpu.memory_space<vmem>>, vector<4x288xf32>
    %cst_34 = arith.constant dense<0.000000e+00> : vector<8x288xf32>
    %34 = tpu.matmul %32, %33, %cst_34 {dimension_numbers = #tpu.dot_dimension_numbers<[1], [0], [0], [1], [0, 0, 1, 1], [], []>} : vector<8x4xf32>, vector<4x288xf32>, vector<8x288xf32> -> vector<8x288xf32>
    %35 = arith.addf %30, %34 : vector<8x288xf32>
    %c5 = arith.constant 5 : index
    %c0_35 = arith.constant 0 : index
    %c0_36 = arith.constant 0 : index
    %36 = vector.load %arg2[%c5, %c0_35, %c0_36] : memref<9x8x4xf32, #tpu.memory_space<vmem>>, vector<1x8x4xf32>
    %37 = vector.shape_cast %36 : vector<1x8x4xf32> to vector<8x4xf32>
    %c0_37 = arith.constant 0 : index
    %c20 = arith.constant 20 : index
    %38 = vector.load %arg8[%c0_37, %c20] : memref<4x384xf32, #tpu.memory_space<vmem>>, vector<4x288xf32>
    %cst_38 = arith.constant dense<0.000000e+00> : vector<8x288xf32>
    %39 = tpu.matmul %37, %38, %cst_38 {dimension_numbers = #tpu.dot_dimension_numbers<[1], [0], [0], [1], [0, 0, 1, 1], [], []>} : vector<8x4xf32>, vector<4x288xf32>, vector<8x288xf32> -> vector<8x288xf32>
    %40 = arith.addf %35, %39 : vector<8x288xf32>
    %c6 = arith.constant 6 : index
    %c0_39 = arith.constant 0 : index
    %c0_40 = arith.constant 0 : index
    %41 = vector.load %arg2[%c6, %c0_39, %c0_40] : memref<9x8x4xf32, #tpu.memory_space<vmem>>, vector<1x8x4xf32>
    %42 = vector.shape_cast %41 : vector<1x8x4xf32> to vector<8x4xf32>
    %c0_41 = arith.constant 0 : index
    %c36 = arith.constant 36 : index
    %43 = vector.load %arg8[%c0_41, %c36] : memref<4x384xf32, #tpu.memory_space<vmem>>, vector<4x288xf32>
    %cst_42 = arith.constant dense<0.000000e+00> : vector<8x288xf32>
    %44 = tpu.matmul %42, %43, %cst_42 {dimension_numbers = #tpu.dot_dimension_numbers<[1], [0], [0], [1], [0, 0, 1, 1], [], []>} : vector<8x4xf32>, vector<4x288xf32>, vector<8x288xf32> -> vector<8x288xf32>
    %45 = arith.addf %40, %44 : vector<8x288xf32>
    %c7 = arith.constant 7 : index
    %c0_43 = arith.constant 0 : index
    %c0_44 = arith.constant 0 : index
    %46 = vector.load %arg2[%c7, %c0_43, %c0_44] : memref<9x8x4xf32, #tpu.memory_space<vmem>>, vector<1x8x4xf32>
    %47 = vector.shape_cast %46 : vector<1x8x4xf32> to vector<8x4xf32>
    %c0_45 = arith.constant 0 : index
    %c37 = arith.constant 37 : index
    %48 = vector.load %arg8[%c0_45, %c37] : memref<4x384xf32, #tpu.memory_space<vmem>>, vector<4x288xf32>
    %cst_46 = arith.constant dense<0.000000e+00> : vector<8x288xf32>
    %49 = tpu.matmul %47, %48, %cst_46 {dimension_numbers = #tpu.dot_dimension_numbers<[1], [0], [0], [1], [0, 0, 1, 1], [], []>} : vector<8x4xf32>, vector<4x288xf32>, vector<8x288xf32> -> vector<8x288xf32>
    %50 = arith.addf %45, %49 : vector<8x288xf32>
    %c8 = arith.constant 8 : index
    %c0_47 = arith.constant 0 : index
    %c0_48 = arith.constant 0 : index
    %51 = vector.load %arg2[%c8, %c0_47, %c0_48] : memref<9x8x4xf32, #tpu.memory_space<vmem>>, vector<1x8x4xf32>
    %52 = vector.shape_cast %51 : vector<1x8x4xf32> to vector<8x4xf32>
    %c0_49 = arith.constant 0 : index
    %c38 = arith.constant 38 : index
    %53 = vector.load %arg8[%c0_49, %c38] : memref<4x384xf32, #tpu.memory_space<vmem>>, vector<4x288xf32>
    %cst_50 = arith.constant dense<0.000000e+00> : vector<8x288xf32>
    %54 = tpu.matmul %52, %53, %cst_50 {dimension_numbers = #tpu.dot_dimension_numbers<[1], [0], [0], [1], [0, 0, 1, 1], [], []>} : vector<8x4xf32>, vector<4x288xf32>, vector<8x288xf32> -> vector<8x288xf32>
    %55 = arith.addf %50, %54 : vector<8x288xf32>
    %c0_51 = arith.constant 0 : index
    %c0_52 = arith.constant 0 : index
    %56 = vector.load %arg3[%c0_51, %c0_52] : memref<8x1xf32, #tpu.memory_space<vmem>>, vector<8x1xf32>
    %57 = vector.broadcast %56 : vector<8x1xf32> to vector<8x288xf32>
    %58 = arith.addf %55, %57 : vector<8x288xf32>
    %c0_53 = arith.constant 0 : index
    %c0_54 = arith.constant 0 : index
    %59 = vector.load %arg4[%c0_53, %c0_54] : memref<1x288xf32, #tpu.memory_space<vmem>>, vector<1x288xf32>
    %60 = vector.broadcast %59 : vector<1x288xf32> to vector<8x288xf32>
    %61 = arith.mulf %58, %60 : vector<8x288xf32>
    %62 = arith.truncf %61 : vector<8x288xf32> to vector<8x288xbf16>
    %c0_55 = arith.constant 0 : index
    %c0_56 = arith.constant 0 : index
    %c0_57 = arith.constant 0 : index
    %63 = vector.load %arg5[%c0_55, %c0_56, %c0_57] : memref<1x8x288xbf16, #tpu.memory_space<vmem>>, vector<1x8x288xbf16>
    %64 = vector.shape_cast %63 : vector<1x8x288xbf16> to vector<8x288xbf16>
    %65 = vector.shape_cast %62 : vector<8x288xbf16> to vector<1x8x288xbf16>
    tpu.vector_store %arg5[%c0_55, %c0_56, %c0_57], %65 {strides = array<i32>} : memref<1x8x288xbf16, #tpu.memory_space<vmem>>, vector<1x8x288xbf16>,
    %cst_58 = arith.constant dense<0.000000e+00> : vector<8xf32>
    %66 = vector.multi_reduction <add>, %61, %cst_58 [1] : vector<8x288xf32> to vector<8xf32>
    %67 = vector.shape_cast %66 : vector<8xf32> to vector<8x1xf32>
    %c0_59 = arith.constant 0 : index
    %c0_60 = arith.constant 0 : index
    %c0_61 = arith.constant 0 : index
    %68 = vector.load %arg6[%c0_59, %c0_60, %c0_61] : memref<1x8x1xf32, #tpu.memory_space<vmem>>, vector<1x8x1xf32>
    %69 = vector.shape_cast %68 : vector<1x8x1xf32> to vector<8x1xf32>
    %70 = vector.shape_cast %67 : vector<8x1xf32> to vector<1x8x1xf32>
    tpu.vector_store %arg6[%c0_59, %c0_60, %c0_61], %70 {strides = array<i32>} : memref<1x8x1xf32, #tpu.memory_space<vmem>>, vector<1x8x1xf32>,
    %71 = arith.mulf %61, %61 : vector<8x288xf32>
    %cst_62 = arith.constant dense<0.000000e+00> : vector<8xf32>
    %72 = vector.multi_reduction <add>, %71, %cst_62 [1] : vector<8x288xf32> to vector<8xf32>
    %73 = vector.shape_cast %72 : vector<8xf32> to vector<8x1xf32>
    %c0_63 = arith.constant 0 : index
    %c0_64 = arith.constant 0 : index
    %c0_65 = arith.constant 0 : index
    %74 = vector.load %arg7[%c0_63, %c0_64, %c0_65] : memref<1x8x1xf32, #tpu.memory_space<vmem>>, vector<1x8x1xf32>
    %75 = vector.shape_cast %74 : vector<1x8x1xf32> to vector<8x1xf32>
    %76 = vector.shape_cast %73 : vector<8x1xf32> to vector<1x8x1xf32>
    tpu.vector_store %arg7[%c0_63, %c0_64, %c0_65], %76 {strides = array<i32>} : memref<1x8x1xf32, #tpu.memory_space<vmem>>, vector<1x8x1xf32>,
    return
  }
  func.func @transform_0(%arg0: i32) -> (i32, i32, i32, i32) {
    %c0_i32 = arith.constant 0 : i32
    %c0_i32_0 = arith.constant 0 : i32
    %c0_i32_1 = arith.constant 0 : i32
    %c0_i32_2 = arith.constant 0 : i32
    return %arg0, %c0_i32, %c0_i32_0, %c0_i32_1 : i32, i32, i32, i32
  }
  func.func @transform_1(%arg0: i32) -> (i32, i32, i32) {
    %c0_i32 = arith.constant 0 : i32
    %c0_i32_0 = arith.constant 0 : i32
    %c0_i32_1 = arith.constant 0 : i32
    %c0_i32_2 = arith.constant 0 : i32
    return %c0_i32, %c0_i32_0, %c0_i32_1 : i32, i32, i32
  }
  func.func @transform_2(%arg0: i32) -> (i32, i32) {
    %c0_i32 = arith.constant 0 : i32
    %c0_i32_0 = arith.constant 0 : i32
    %c0_i32_1 = arith.constant 0 : i32
    return %c0_i32, %c0_i32_0 : i32, i32
  }
  func.func @transform_3(%arg0: i32) -> (i32, i32) {
    %c0_i32 = arith.constant 0 : i32
    %c0_i32_0 = arith.constant 0 : i32
    %c0_i32_1 = arith.constant 0 : i32
    return %c0_i32, %c0_i32_0 : i32, i32
  }
  func.func @transform_4(%arg0: i32) -> (i32, i32, i32) {
    %c0_i32 = arith.constant 0 : i32
    %c0_i32_0 = arith.constant 0 : i32
    %c0_i32_1 = arith.constant 0 : i32
    return %arg0, %c0_i32, %c0_i32_0 : i32, i32, i32
  }
  func.func @transform_5(%arg0: i32) -> (i32, i32, i32) {
    %c0_i32 = arith.constant 0 : i32
    %c0_i32_0 = arith.constant 0 : i32
    %c0_i32_1 = arith.constant 0 : i32
    return %arg0, %c0_i32, %c0_i32_0 : i32, i32, i32
  }
  func.func @transform_6(%arg0: i32) -> (i32, i32, i32) {
    %c0_i32 = arith.constant 0 : i32
    %c0_i32_0 = arith.constant 0 : i32
    %c0_i32_1 = arith.constant 0 : i32
    return %arg0, %c0_i32, %c0_i32_0 : i32, i32, i32
  }
}

</mosaic_0001>

<llo_original>
// kernel: tpu_custom_call.1
$region0: #{tpu_custom_call.1}
  #allocation0 [shape = 'u32[]', space=smem, size = 0x4, offset = 0x4, fixed_abs, tag = 'smem constant byte address 0x4 - core index']
  #allocation1 [shape = 'u32[72,128]{1,0:T(1,128)}', space=vmem, size = 0x9000, scoped, tag = 'internal scratch']
  #allocation2 [shape = 'f32[4,384]{1,0:T(4,128)}', space=vmem, size = 0x1800, scoped, tag = 'scratch operand']
  %s0 = inlined_call_operand.hbm [shape: f32[2,4,16,16], index: 0, kind: input, shape index: {}]
  %s1 = inlined_call_operand.vmem [shape: f32[9,8,4], index: 1, kind: input, shape index: {}]
  %s2 = inlined_call_operand.vmem [shape: f32[8,1], index: 2, kind: input, shape index: {}]
  %s3 = inlined_call_operand.vmem [shape: f32[1,288], index: 3, kind: input, shape index: {}]
  %s4 = inlined_call_operand.hbm [shape: bf16[2,8,288], index: 4, kind: output, shape index: {0}]
  %s5 = inlined_call_operand.vmem [shape: f32[2,8,1], index: 5, kind: output, shape index: {1}]
  %s6 = inlined_call_operand.vmem [shape: f32[2,8,1], index: 6, kind: output, shape index: {2}]
  %7 = xla_tuple %s4, %s5, %s6
  %s8 = sld [smem:[#allocation0]]
  $region69: #{tpu_custom_call.1} parent=0
    _
  %s10 = ssub.s32 1, %s8
  %s11 = scalar_select 0, %s10, %s8
  $region1: #{tpu_custom_call.1} parent=0
    #allocation3 [shape = 'u8[65536]{0}', space=vmem, size = 0x10000, scoped, tag = 'input window, operand 0']
    #allocation4 [shape = 's32[2]{0}', space=sflag, size = 0x8, scoped, tag = 'scoped memory for tpu_custom_call.1']
    #allocation5 [shape = 's32[2]{0}', space=sflag, size = 0x8, scoped, tag = 'scoped memory for tpu_custom_call.1']
    #allocation6 [shape = 'u8[12288]{0}', space=vmem, size = 0x3000, scoped, tag = 'output window, operand 0']
    %12 = vsyncpa [#allocation4], 0
    %s13 = scalar_lea.sflag [#allocation4], 1
    %14 = vsyncpa %s13, 0
    %15 = vsyncpa [#allocation5], 0
    %s16 = scalar_lea.sflag [#allocation5], 1
    %17 = vsyncpa %s16, 0
    loop: start=0, step=1, limit=4
    $region2: #{tpu_custom_call.1} parent=1 // loop_pre_header
      _
    $region3: #{tpu_custom_call.1} parent=1 // loop_header
      %s19 = sphi 0, %s23
      %p20 = scmp.ge.s32.totalorder %s19, 4
      %s29 = sphi 0, %s31
      %s32 = sphi 0, %s29
      %s33 = sphi 0, %s32
      %s49 = sphi 0, %s33
      %s53 = sphi 0, %s53
      %s55 = sphi 0, %s53
      %s56 = sphi 0, %s55
      %s70 = sphi 0, %s56
      %s74 = sphi 0, %s74
      %s76 = sphi 0, %s74
      %s77 = sphi 0, %s76
      %s91 = sphi 0, %s77
      %s95 = sphi 0, %s95
      %s97 = sphi 0, %s95
      %s98 = sphi 0, %s97
      %s112 = sphi 0, %s98
      %s118 = sphi 0, %s120
      %s121 = sphi 0, %s118
      %s122 = sphi 0, %s121
      %s138 = sphi 0, %s122
      %s144 = sphi 0, %s146
      %s147 = sphi 0, %s144
      %s148 = sphi 0, %s147
      %s164 = sphi 0, %s148
      %s170 = sphi 0, %s172
      %s173 = sphi 0, %s170
      %s174 = sphi 0, %s173
      %s190 = sphi 0, %s174
    $region4: #{tpu_custom_call.1} parent=1 // loop_header_branch
      %22 = sbr.rel (%p20) target = $region8
    $region5: #{tpu_custom_call.1} parent=1 // loop_body
      %s24 = ssub.s32 %s19, 1
      %s25 = ssub.s32 %s19, 2
      %s26 = sadd.s32 %s19, 1
      %s27 = ssub.s32 %s19, %s26
      %p28 = scmp.eq.s32.totalorder %s27, 0
      %s30 = sadd.s32 %s29, 1
      %s31 = scalar_select %p28, %s29, %s30
      %p34 = pneg %p28
      %p35 = scmp.eq.s32.totalorder %s19, 1
      %p36 = por %p34, %p35
      %p37 = scmp.ne.s32.totalorder %s29, %s32
      %p38 = scmp.eq.s32.totalorder %s19, 0
      %p39 = por %p37, %p38
      %p40 = scmp.ne.s32.totalorder %s29, %s32
      %p41 = scmp.eq.s32.totalorder %s24, 1
      %p42 = por %p40, %p41
      %p43 = scmp.ne.s32.totalorder %s32, %s33
      %p44 = scmp.eq.s32.totalorder %s24, 0
      %p45 = por %p43, %p44
      %p46 = scmp.ne.s32.totalorder %s32, %s33
      %p47 = scmp.eq.s32.totalorder %s25, 1
      %p48 = por %p46, %p47
      %p50 = scmp.ne.s32.totalorder %s33, %s49
      %p51 = scmp.eq.s32.totalorder %s25, 0
      %p52 = por %p50, %p51
      %s54 = sadd.s32 %s53, 1
      %p57 = scmp.eq.s32.totalorder %s19, 1
      %p58 = scmp.ne.s32.totalorder %s53, %s55
      %p59 = scmp.eq.s32.totalorder %s19, 0
      %p60 = por %p58, %p59
      %p61 = scmp.ne.s32.totalorder %s53, %s55
      %p62 = scmp.eq.s32.totalorder %s24, 1
      %p63 = por %p61, %p62
      %p64 = scmp.ne.s32.totalorder %s55, %s56
      %p65 = scmp.eq.s32.totalorder %s24, 0
      %p66 = por %p64, %p65
      %p67 = scmp.ne.s32.totalorder %s55, %s56
      %p68 = scmp.eq.s32.totalorder %s25, 1
      %p69 = por %p67, %p68
      %p71 = scmp.ne.s32.totalorder %s56, %s70
      %p72 = scmp.eq.s32.totalorder %s25, 0
      %p73 = por %p71, %p72
      %s75 = sadd.s32 %s74, 1
      %p78 = scmp.eq.s32.totalorder %s19, 1
      %p79 = scmp.ne.s32.totalorder %s74, %s76
      %p80 = scmp.eq.s32.totalorder %s19, 0
      %p81 = por %p79, %p80
      %p82 = scmp.ne.s32.totalorder %s74, %s76
      %p83 = scmp.eq.s32.totalorder %s24, 1
      %p84 = por %p82, %p83
      %p85 = scmp.ne.s32.totalorder %s76, %s77
      %p86 = scmp.eq.s32.totalorder %s24, 0
      %p87 = por %p85, %p86
      %p88 = scmp.ne.s32.totalorder %s76, %s77
      %p89 = scmp.eq.s32.totalorder %s25, 1
      %p90 = por %p88, %p89
      %p92 = scmp.ne.s32.totalorder %s77, %s91
      %p93 = scmp.eq.s32.totalorder %s25, 0
      %p94 = por %p92, %p93
      %s96 = sadd.s32 %s95, 1
      %p99 = scmp.eq.s32.totalorder %s19, 1
      %p100 = scmp.ne.s32.totalorder %s95, %s97
      %p101 = scmp.eq.s32.totalorder %s19, 0
      %p102 = por %p100, %p101
      %p103 = scmp.ne.s32.totalorder %s95, %s97
      %p104 = scmp.eq.s32.totalorder %s24, 1
      %p105 = por %p103, %p104
      %p106 = scmp.ne.s32.totalorder %s97, %s98
      %p107 = scmp.eq.s32.totalorder %s24, 0
      %p108 = por %p106, %p107
      %p109 = scmp.ne.s32.totalorder %s97, %s98
      %p110 = scmp.eq.s32.totalorder %s25, 1
      %p111 = por %p109, %p110
      %p113 = scmp.ne.s32.totalorder %s98, %s112
      %p114 = scmp.eq.s32.totalorder %s25, 0
      %p115 = por %p113, %p114
      %s116 = ssub.s32 %s19, %s26
      %p117 = scmp.eq.s32.totalorder %s116, 0
      %s119 = sadd.s32 %s118, 1
      %s120 = scalar_select %p117, %s118, %s119
      %p123 = pneg %p117
      %p124 = scmp.eq.s32.totalorder %s19, 1
      %p125 = por %p123, %p124
      %p126 = scmp.ne.s32.totalorder %s118, %s121
      %p127 = scmp.eq.s32.totalorder %s19, 0
      %p128 = por %p126, %p127
      %p129 = scmp.ne.s32.totalorder %s118, %s121
      %p130 = scmp.eq.s32.totalorder %s24, 1
      %p131 = por %p129, %p130
      %p132 = scmp.ne.s32.totalorder %s121, %s122
      %p133 = scmp.eq.s32.totalorder %s24, 0
      %p134 = por %p132, %p133
      %p135 = scmp.ne.s32.totalorder %s121, %s122
      %p136 = scmp.eq.s32.totalorder %s25, 1
      %p137 = por %p135, %p136
      %p139 = scmp.ne.s32.totalorder %s122, %s138
      %p140 = scmp.eq.s32.totalorder %s25, 0
      %p141 = por %p139, %p140
      %s142 = ssub.s32 %s19, %s26
      %p143 = scmp.eq.s32.totalorder %s142, 0
      %s145 = sadd.s32 %s144, 1
      %s146 = scalar_select %p143, %s144, %s145
      %p149 = pneg %p143
      %p150 = scmp.eq.s32.totalorder %s19, 1
      %p151 = por %p149, %p150
      %p152 = scmp.ne.s32.totalorder %s144, %s147
      %p153 = scmp.eq.s32.totalorder %s19, 0
      %p154 = por %p152, %p153
      %p155 = scmp.ne.s32.totalorder %s144, %s147
      %p156 = scmp.eq.s32.totalorder %s24, 1
      %p157 = por %p155, %p156
      %p158 = scmp.ne.s32.totalorder %s147, %s148
      %p159 = scmp.eq.s32.totalorder %s24, 0
      %p160 = por %p158, %p159
      %p161 = scmp.ne.s32.totalorder %s147, %s148
      %p162 = scmp.eq.s32.totalorder %s25, 1
      %p163 = por %p161, %p162
      %p165 = scmp.ne.s32.totalorder %s148, %s164
      %p166 = scmp.eq.s32.totalorder %s25, 0
      %p167 = por %p165, %p166
      %s168 = ssub.s32 %s19, %s26
      %p169 = scmp.eq.s32.totalorder %s168, 0
      %s171 = sadd.s32 %s170, 1
      %s172 = scalar_select %p169, %s170, %s171
      %p175 = pneg %p169
      %p176 = scmp.eq.s32.totalorder %s19, 1
      %p177 = por %p175, %p176
      %p178 = scmp.ne.s32.totalorder %s170, %s173
      %p179 = scmp.eq.s32.totalorder %s19, 0
      %p180 = por %p178, %p179
      %p181 = scmp.ne.s32.totalorder %s170, %s173
      %p182 = scmp.eq.s32.totalorder %s24, 1
      %p183 = por %p181, %p182
      %p184 = scmp.ne.s32.totalorder %s173, %s174
      %p185 = scmp.eq.s32.totalorder %s24, 0
      %p186 = por %p184, %p185
      %p187 = scmp.ne.s32.totalorder %s173, %s174
      %p188 = scmp.eq.s32.totalorder %s25, 1
      %p189 = por %p187, %p188
      %p191 = scmp.ne.s32.totalorder %s174, %s190
      %p192 = scmp.eq.s32.totalorder %s25, 0
      %p193 = por %p191, %p192
      %p194 = scmp.le.s32.totalorder 1, %s19
      %p195 = scmp.lt.s32.totalorder %s19, 3
      %p196 = pnand %p194, %p195
      %p197 = pneg %p196
      // Predicated region
      $region9: #{tpu_custom_call.1} parent=5 // pred_check
        _
      $region10: #{tpu_custom_call.1} parent=5 // pred_check_branch
        %199 = sbr.rel (%p196) target = $region12
      $region11: #{tpu_custom_call.1} parent=5 // pred_region
        %s200 = ssub.s32 %s19, 1
        // Predicated region
        $region13: #{tpu_custom_call.1} parent=11 // pred_check
          %p201 = pneg %p66
        $region14: #{tpu_custom_call.1} parent=11 // pred_check_branch
          %203 = sbr.rel (%p201) target = $region16
        $region15: #{tpu_custom_call.1} parent=11 // pred_region
          _
        $region16: #{tpu_custom_call.1} parent=11 // pred_fallthru
          _
        // Predicated region
        $region17: #{tpu_custom_call.1} parent=11 // pred_check
          %p204 = pneg %p87
        $region18: #{tpu_custom_call.1} parent=11 // pred_check_branch
          %206 = sbr.rel (%p204) target = $region20
        $region19: #{tpu_custom_call.1} parent=11 // pred_region
          _
        $region20: #{tpu_custom_call.1} parent=11 // pred_fallthru
          _
        // Predicated region
        $region21: #{tpu_custom_call.1} parent=11 // pred_check
          %p207 = pneg %p108
        $region22: #{tpu_custom_call.1} parent=11 // pred_check_branch
          %209 = sbr.rel (%p207) target = $region24
        $region23: #{tpu_custom_call.1} parent=11 // pred_region
          _
        $region24: #{tpu_custom_call.1} parent=11 // pred_fallthru
          _
      $region12: #{tpu_custom_call.1} parent=5 // pred_fallthru
        _
      %p210 = scmp.lt.s32.totalorder %s19, 2
      // Predicated region
      $region25: #{tpu_custom_call.1} parent=5 // pred_check
        %p211 = pneg %p210
      $region26: #{tpu_custom_call.1} parent=5 // pred_check_branch
        %213 = sbr.rel (%p211) target = $region28
      $region27: #{tpu_custom_call.1} parent=5 // pred_region
        // Predicated region
        $region29: #{tpu_custom_call.1} parent=27 // pred_check
          %p214 = pneg %p39
        $region30: #{tpu_custom_call.1} parent=27 // pred_check_branch
          %216 = sbr.rel (%p214) target = $region32
        $region31: #{tpu_custom_call.1} parent=27 // pred_region
          %s217 = sand.u32 %s29, 1
          %s218 = scalar_lea.sflag [#allocation4], %s217
          %s219 = sand.u32 %s29, 1
          %s220 = smul.addr %s219, 64
          %s221 = scalar_lea.vmem [#allocation3], %s220
          %223 = vsyncadd %s218, 0
          %s224 = smul.addr %s19, 8
          %s225 = smul.addr %s224, 8
          %s226 = scalar_lea.hbm %s0, %s225
          %s227 = sshll.u32 %s226, 4
          %s228 = int_to_ptr.hbm [resolvable:$true] %s227
          %s229 = sshll.u32 %s221, 4
          %s230 = int_to_ptr.vmem [resolvable:$true] %s229
          %235 = dma.hbm_to_vmem [thread:$0]  %s228, 1024, %s230, %s218, 128, 128, 8
        $region32: #{tpu_custom_call.1} parent=27 // pred_fallthru
          _
      $region28: #{tpu_custom_call.1} parent=5 // pred_fallthru
        _
      %p236 = scmp.le.s32.totalorder 1, %s19
      %p237 = scmp.lt.s32.totalorder %s19, 3
      %p238 = pnand %p236, %p237
      %p239 = pneg %p238
      // Predicated region
      $region33: #{tpu_custom_call.1} parent=5 // pred_check
        _
      $region34: #{tpu_custom_call.1} parent=5 // pred_check_branch
        %241 = sbr.rel (%p238) target = $region36
      $region35: #{tpu_custom_call.1} parent=5 // pred_region
        %s242 = ssub.s32 %s19, 1
        %s243 = sand.u32 %s32, 1
        %s244 = scalar_lea.sflag [#allocation4], %s243
        %s245 = sand.u32 %s32, 1
        %s246 = smul.addr %s245, 64
        %s247 = scalar_lea.vmem [#allocation3], %s246
        // Predicated region
        $region37: #{tpu_custom_call.1} parent=35 // pred_check
          %p248 = pneg %p45
        $region38: #{tpu_custom_call.1} parent=35 // pred_check_branch
          %250 = sbr.rel (%p248) target = $region40
        $region39: #{tpu_custom_call.1} parent=35 // pred_region
          %252 = dma.done %s244, 1024
        $region40: #{tpu_custom_call.1} parent=35 // pred_fallthru
          _
        %s253 = sand.u32 %s32, 1
        %s254 = scalar_lea.sflag [#allocation4], %s253
        %s255 = sand.u32 %s32, 1
        %s256 = smul.addr %s255, 64
        %s257 = scalar_lea.vmem [#allocation3], %s256
        %p258 = pneg %p45
        %p259 = pneg %p42
        %p260 = pneg %p66
        %p261 = pneg %p63
        %p262 = pneg %p87
        %p263 = pneg %p84
        %p264 = pneg %p108
        %p265 = pneg %p105
        %p266 = pneg %p134
        %p267 = pneg %p131
        %s268 = sand.u32 %s121, 1
        %s269 = scalar_lea.sflag [#allocation5], %s268
        %s270 = sand.u32 %s121, 1
        %s271 = smul.addr %s270, 12
        %s272 = scalar_lea.vmem [#allocation6], %s271
        %p273 = pneg %p160
        %p274 = pneg %p157
        %p275 = scmp.lt.s32.totalorder %s24, 1
        %s276 = scalar_select %p275, %s24, 1
        %s277 = smul.addr %s276, 8
        %s278 = scalar_lea.vmem %s5, %s277
        %p279 = pneg %p186
        %p280 = pneg %p183
        %p281 = scmp.lt.s32.totalorder %s24, 1
        %s282 = scalar_select %p281, %s24, 1
        %s283 = smul.addr %s282, 8
        %s284 = scalar_lea.vmem %s6, %s283
        %p285 = scmp.lt.s32.totalorder %s24, 1
        %s286 = scalar_select %p285, %s24, 1
        %s287 = smul.addr %s286, 8
        %s288 = scalar_lea.vmem %s5, %s287
        %p289 = scmp.lt.s32.totalorder %s24, 1
        %s290 = scalar_select %p289, %s24, 1
        %s291 = smul.addr %s290, 8
        %s292 = scalar_lea.vmem %s6, %s291
        %vm293 = vcmask 150528
        %294 = vst.msk [vmem:[#allocation2] sm:$0xf] %vm293, 0.0
        %vm295 = vcmask 1043864
        %296 = vst.msk [vmem:[#allocation2 + $0x8] sm:$0xf] %vm295, 0.0
        %v297 = vld [vmem:[%s247] sm:$0xff]
        %v298 = vld [vmem:[%s247 + $0x8] sm:$0xff]
        %v299 = vld [vmem:[%s247 + $0x10] sm:$0xff]
        %v300 = vld [vmem:[%s247 + $0x18] sm:$0xff]
        %v301 = vld [vmem:[%s247 + $0x20] sm:$0xff]
        %v302 = vld [vmem:[%s247 + $0x28] sm:$0xff]
        %v303 = vld [vmem:[%s247 + $0x30] sm:$0xff]
        %v304 = vld [vmem:[%s247 + $0x38] sm:$0xff]
        %vm305 = vcmask 130048
        %v306 = vsel %vm305, %v297, 0.0
        %v307 = vsel %vm305, %v298, 0.0
        %v308 = vsel %vm305, %v299, 0.0
        %v309 = vsel %vm305, %v300, 0.0
        %v310 = vsel %vm305, %v301, 0.0
        %v311 = vsel %vm305, %v302, 0.0
        %v312 = vsel %vm305, %v303, 0.0
        %v313 = vsel %vm305, %v304, 0.0
        %v314 = vrot.slane %v310, 4
        %vm315 = vcmask 1047556
        %v316 = vsel %vm315, %v314, %v306
        %v317 = vrot.slane %v306, 4
        %v318 = vsel %vm315, %v310, %v317
        %v320 = vunpack.c.l.s4 1983009808
        %v321 = vunpack.c.0.s8 %v320
        %v322 = vperm.slane %v316, %v321
        %v324 = vunpack.c.l.s4 1983009808
        %v325 = vunpack.c.0.s8 %v324
        %v326 = vperm.slane %v318, %v325
        %v327 = vrot.slane %v312, 4
        %v328 = vsel %vm315, %v327, %v308
        %v329 = vrot.slane %v308, 4
        %v330 = vsel %vm315, %v312, %v329
        %v332 = vunpack.c.l.s4 1983009808
        %v333 = vunpack.c.0.s8 %v332
        %v334 = vperm.slane %v328, %v333
        %v336 = vunpack.c.l.s4 1983009808
        %v337 = vunpack.c.0.s8 %v336
        %v338 = vperm.slane %v330, %v337
        %v339 = vrot.slane %v334, 4
        %v340 = vsel %vm315, %v339, %v322
        %v341 = vrot.slane %v322, 4
        %v342 = vsel %vm315, %v334, %v341
        %v344 = vunpack.c.l.s4 1934713408
        %v345 = vunpack.c.0.s8 %v344
        %v346 = vperm.slane %v340, %v345
        %v348 = vunpack.c.l.s4 1934713408
        %v349 = vunpack.c.0.s8 %v348
        %v350 = vperm.slane %v342, %v349
        %v351 = vrot.slane %v338, 4
        %v352 = vsel %vm315, %v351, %v326
        %v353 = vrot.slane %v326, 4
        %v354 = vsel %vm315, %v338, %v353
        %v356 = vunpack.c.l.s4 1934713408
        %v357 = vunpack.c.0.s8 %v356
        %v358 = vperm.slane %v352, %v357
        %v360 = vunpack.c.l.s4 1934713408
        %v361 = vunpack.c.0.s8 %v360
        %v362 = vperm.slane %v354, %v361
        %v363 = vrot.slane %v346, 4
        %v364 = vsel %vm315, 0.0, %v363
        %v365 = vrot.slane %v350, 4
        %v366 = vsel %vm315, 0.0, %v365
        %v367 = vrot.slane %v358, 4
        %v368 = vsel %vm315, 0.0, %v367
        %v369 = vrot.slane %v362, 4
        %v370 = vsel %vm315, 0.0, %v369
        %v371 = vrot.slane %v311, 4
        %v372 = vsel %vm315, %v371, %v307
        %v373 = vrot.slane %v307, 4
        %v374 = vsel %vm315, %v311, %v373
        %v376 = vunpack.c.l.s4 1983009808
        %v377 = vunpack.c.0.s8 %v376
        %v378 = vperm.slane %v372, %v377
        %v380 = vunpack.c.l.s4 1983009808
        %v381 = vunpack.c.0.s8 %v380
        %v382 = vperm.slane %v374, %v381
        %v383 = vrot.slane %v313, 4
        %v384 = vsel %vm315, %v383, %v309
        %v385 = vrot.slane %v309, 4
        %v386 = vsel %vm315, %v313, %v385
        %v388 = vunpack.c.l.s4 1983009808
        %v389 = vunpack.c.0.s8 %v388
        %v390 = vperm.slane %v384, %v389
        %v392 = vunpack.c.l.s4 1983009808
        %v393 = vunpack.c.0.s8 %v392
        %v394 = vperm.slane %v386, %v393
        %v395 = vrot.slane %v390, 4
        %v396 = vsel %vm315, %v395, %v378
        %v397 = vrot.slane %v378, 4
        %v398 = vsel %vm315, %v390, %v397
        %v400 = vunpack.c.l.s4 1934713408
        %v401 = vunpack.c.0.s8 %v400
        %v402 = vperm.slane %v396, %v401
        %v404 = vunpack.c.l.s4 1934713408
        %v405 = vunpack.c.0.s8 %v404
        %v406 = vperm.slane %v398, %v405
        %v407 = vrot.slane %v394, 4
        %v408 = vsel %vm315, %v407, %v382
        %v409 = vrot.slane %v382, 4
        %v410 = vsel %vm315, %v394, %v409
        %v412 = vunpack.c.l.s4 1934713408
        %v413 = vunpack.c.0.s8 %v412
        %v414 = vperm.slane %v408, %v413
        %v416 = vunpack.c.l.s4 1934713408
        %v417 = vunpack.c.0.s8 %v416
        %v418 = vperm.slane %v410, %v417
        %v419 = vrot.slane %v402, 4
        %v420 = vsel %vm315, 0.0, %v419
        %v421 = vrot.slane %v406, 4
        %v422 = vsel %vm315, 0.0, %v421
        %v423 = vrot.slane %v414, 4
        %v424 = vsel %vm315, 0.0, %v423
        %v425 = vrot.slane %v418, 4
        %v426 = vsel %vm315, 0.0, %v425
        %428 = vrot.lane.b32.xlu0 %v364, 18
        %v429 = vpop.permute.xlu0 %428
        %432 = vrot.lane.b32.xlu0 %v350, 36
        %v433 = vpop.permute.xlu0 %432
        %436 = vrot.lane.b32.xlu0 %v366, 54
        %v437 = vpop.permute.xlu0 %436
        %440 = vrot.lane.b32.xlu0 %v358, 72
        %v441 = vpop.permute.xlu0 %440
        %444 = vrot.lane.b32.xlu0 %v368, 90
        %v445 = vpop.permute.xlu0 %444
        %448 = vrot.lane.b32.xlu0 %v362, 108
        %v449 = vpop.permute.xlu0 %448
        %452 = vrot.lane.b32.xlu0 %v370, 126
        %v453 = vpop.permute.xlu0 %452
        %456 = vrot.lane.b32.xlu0 %v402, 16
        %v457 = vpop.permute.xlu0 %456
        %460 = vrot.lane.b32.xlu0 %v420, 34
        %v461 = vpop.permute.xlu0 %460
        %464 = vrot.lane.b32.xlu0 %v406, 52
        %v465 = vpop.permute.xlu0 %464
        %468 = vrot.lane.b32.xlu0 %v422, 70
        %v469 = vpop.permute.xlu0 %468
        %472 = vrot.lane.b32.xlu0 %v414, 88
        %v473 = vpop.permute.xlu0 %472
        %476 = vrot.lane.b32.xlu0 %v424, 106
        %v477 = vpop.permute.xlu0 %476
        %480 = vrot.lane.b32.xlu0 %v418, 124
        %v481 = vpop.permute.xlu0 %480
        %484 = vrot.lane.b32.xlu0 %v426, 14
        %v485 = vpop.permute.xlu0 %484
        %vm487 = vcmask 146432
        %v488 = vsel %vm487, %v346, %v429
        %vm489 = vcmask 293888
        %v490 = vsel %vm489, %v488, %v433
        %vm491 = vcmask 441344
        %v492 = vsel %vm491, %v490, %v437
        %vm493 = vcmask 588800
        %v494 = vsel %vm493, %v492, %v441
        %vm495 = vcmask 736256
        %v496 = vsel %vm495, %v494, %v445
        %vm497 = vcmask 883712
        %v498 = vsel %vm497, %v496, %v449
        %vm499 = vcmask 1031168
        %v500 = vsel %vm499, %v498, %v453
        %v501 = vsel %vm305, %v453, %v457
        %vm502 = vcmask 277504
        %v503 = vsel %vm502, %v501, %v461
        %vm504 = vcmask 424960
        %v505 = vsel %vm504, %v503, %v465
        %vm506 = vcmask 572416
        %v507 = vsel %vm506, %v505, %v469
        %vm508 = vcmask 719872
        %v509 = vsel %vm508, %v507, %v473
        %vm510 = vcmask 867328
        %v511 = vsel %vm510, %v509, %v477
        %vm512 = vcmask 1014784
        %v513 = vsel %vm512, %v511, %v481
        %vm514 = vcmask 113664
        %v515 = vsel %vm514, %v481, %v485
        %v519 = vrot.slane %v513, 4
        %vm520 = vcmask 1043456
        %v521 = vsel %vm520, %v500, %v519
        %522 = vrot.lane.b32.xlu0 %v521, 19
        %v523 = vpop.permute.xlu0 %522
        %524 = vrot.lane.b32.xlu0 %v515, 19
        %v525 = vpop.permute.xlu0 %524
        %v526 = vrot.slane %v523, 4
        %vm527 = vcmask 154624
        %v528 = vsel %vm527, %v526, %v523
        %v529 = vsel %vm527, %v526, %v525
        %vm532 = vcmask 1043608
        %vm533 = vmor %vm315, %vm532
        %534 = vst.msk [vmem:[#allocation2] sm:$0xff] %vm533, %v528
        %vm535 = vcmask 412672
        %536 = vst.msk [vmem:[#allocation2 + $0x8] sm:$0xf] %vm535, %v529
        %v537 = vld [vmem:[%s1] sm:$0xff]
        %v538 = vld [vmem:[#allocation2] sm:$0xff]
        %v539 = vld [vmem:[#allocation2 + $0x8] sm:$0xf]
        %s540 = scalar_lea.vmem %s1, 8
        %v541 = vld [vmem:[%s540] sm:$0xff]
        %544 = vst [vmem:[#allocation1] ss:$2 sm:$0xff] %v538
        %s545 = scalar_lea.vmem [#allocation1], 16
        %546 = vst [vmem:[%s545] ss:$2 sm:$0xff] %v539
        %v547 = vld.sshfl [vmem:[#allocation1] sm:$0xff pattern:$0x75316420]
        %v548 = vld.sshfl [vmem:[#allocation1 + $0x8] sm:$0xff pattern:$0x75316420]
        %v549 = vld.sshfl [vmem:[#allocation1 + $0x10] sm:$0xff pattern:$0x75316420]
        %550 = vrot.lane.b32.xlu0 %v547, 127
        %v551 = vpop.permute.xlu0 %550
        %552 = vrot.lane.b32.xlu0 %v548, 127
        %v553 = vpop.permute.xlu0 %552
        %554 = vrot.lane.b32.xlu0 %v549, 127
        %v555 = vpop.permute.xlu0 %554
        %vm556 = vcmask 1039360
        %v557 = vsel %vm556, %v551, %v553
        %v558 = vsel %vm556, %v553, %v555
        %vm559 = vcmask 31744
        %v561 = vsel %vm559, %v541, 0
        %v563 = vsel %vm520, %v557, 0
        %v565 = vsel %vm520, %v558, 0
        %v567 = vsel %vm520, %v555, 0
        %569 = vmatpush.msra.mxu0 0.0
        %570 = vmatpush.msra.mxu0 0.0
        %571 = vmatpush.msra.mxu0 0.0
        %572 = vmatpush.msra.mxu0 0.0
        %573 = vmatpush.msra.mxu0 0.0
        %574 = vmatpush.msra.mxu0 0.0
        %575 = vmatpush.msra.mxu0 0.0
        %576 = vmatpush.msra.mxu0 0.0
        %577 = vmatpush.msra.mxu0 0.0
        %578 = vmatpush.msra.mxu0 0.0
        %579 = vmatpush.msra.mxu0 0.0
        %580 = vmatpush.msra.mxu0 0.0
        %581 = vmatpush.msra.mxu0 0.0
        %582 = vmatpush.msra.mxu0 0.0
        %583 = vmatpush.msra.mxu0 0.0
        %584 = vmatpush.msra.mxu0 %v563
        %585 = vmatmul.f32.gmra.mxu0 %v561
        %v586 = vpop.f32.mrf.mxu0
        %v587 = vadd.f32 0.0, %v586
        %588 = vdwg.mxu0
        %589 = vmatpush.msra.mxu0 0.0
        %590 = vmatpush.msra.mxu0 0.0
        %591 = vmatpush.msra.mxu0 0.0
        %592 = vmatpush.msra.mxu0 0.0
        %593 = vmatpush.msra.mxu0 0.0
        %594 = vmatpush.msra.mxu0 0.0
        %595 = vmatpush.msra.mxu0 0.0
        %596 = vmatpush.msra.mxu0 0.0
        %597 = vmatpush.msra.mxu0 0.0
        %598 = vmatpush.msra.mxu0 0.0
        %599 = vmatpush.msra.mxu0 0.0
        %600 = vmatpush.msra.mxu0 0.0
        %601 = vmatpush.msra.mxu0 0.0
        %602 = vmatpush.msra.mxu0 0.0
        %603 = vmatpush.msra.mxu0 0.0
        %604 = vmatpush.msra.mxu0 %v565
        %605 = vmatmul.f32.gmra.mxu0 %v561
        %v606 = vpop.f32.mrf.mxu0
        %v607 = vadd.f32 0.0, %v606
        %608 = vdwg.mxu0
        %609 = vmatpush.msra.mxu0 0.0
        %610 = vmatpush.msra.mxu0 0.0
        %611 = vmatpush.msra.mxu0 0.0
        %612 = vmatpush.msra.mxu0 0.0
        %613 = vmatpush.msra.mxu0 0.0
        %614 = vmatpush.msra.mxu0 0.0
        %615 = vmatpush.msra.mxu0 0.0
        %616 = vmatpush.msra.mxu0 0.0
        %617 = vmatpush.msra.mxu0 0.0
        %618 = vmatpush.msra.mxu0 0.0
        %619 = vmatpush.msra.mxu0 0.0
        %620 = vmatpush.msra.mxu0 0.0
        %621 = vmatpush.msra.mxu0 0.0
        %622 = vmatpush.msra.mxu0 0.0
        %623 = vmatpush.msra.mxu0 0.0
        %624 = vmatpush.msra.mxu0 %v567
        %625 = vmatmul.f32.gmra.mxu0 %v561
        %v626 = vpop.f32.mrf.mxu0
        %v627 = vadd.f32 0.0, %v626
        %628 = vdwg.mxu0
        %629 = vst [vmem:[#allocation1] ss:$2 sm:$0xff] %v538
        %s630 = scalar_lea.vmem [#allocation1], 16
        %631 = vst [vmem:[%s630] ss:$2 sm:$0xff] %v539
        %v632 = vld.sshfl [vmem:[#allocation1] sm:$0xff pattern:$0x75316420]
        %v633 = vld.sshfl [vmem:[#allocation1 + $0x8] sm:$0xff pattern:$0x75316420]
        %v634 = vld.sshfl [vmem:[#allocation1 + $0x10] sm:$0xff pattern:$0x75316420]
        %v636 = vsel %vm559, %v537, 0
        %v638 = vsel %vm520, %v632, 0
        %v640 = vsel %vm520, %v633, 0
        %v642 = vsel %vm520, %v634, 0
        %644 = vmatpush.msra.mxu0 0.0
        %645 = vmatpush.msra.mxu0 0.0
        %646 = vmatpush.msra.mxu0 0.0
        %647 = vmatpush.msra.mxu0 0.0
        %648 = vmatpush.msra.mxu0 0.0
        %649 = vmatpush.msra.mxu0 0.0
        %650 = vmatpush.msra.mxu0 0.0
        %651 = vmatpush.msra.mxu0 0.0
        %652 = vmatpush.msra.mxu0 0.0
        %653 = vmatpush.msra.mxu0 0.0
        %654 = vmatpush.msra.mxu0 0.0
        %655 = vmatpush.msra.mxu0 0.0
        %656 = vmatpush.msra.mxu0 0.0
        %657 = vmatpush.msra.mxu0 0.0
        %658 = vmatpush.msra.mxu0 0.0
        %659 = vmatpush.msra.mxu0 %v638
        %660 = vmatmul.f32.gmra.mxu0 %v636
        %v661 = vpop.f32.mrf.mxu0
        %v662 = vadd.f32 %v587, %v661
        %663 = vdwg.mxu0
        %664 = vmatpush.msra.mxu0 0.0
        %665 = vmatpush.msra.mxu0 0.0
        %666 = vmatpush.msra.mxu0 0.0
        %667 = vmatpush.msra.mxu0 0.0
        %668 = vmatpush.msra.mxu0 0.0
        %669 = vmatpush.msra.mxu0 0.0
        %670 = vmatpush.msra.mxu0 0.0
        %671 = vmatpush.msra.mxu0 0.0
        %672 = vmatpush.msra.mxu0 0.0
        %673 = vmatpush.msra.mxu0 0.0
        %674 = vmatpush.msra.mxu0 0.0
        %675 = vmatpush.msra.mxu0 0.0
        %676 = vmatpush.msra.mxu0 0.0
        %677 = vmatpush.msra.mxu0 0.0
        %678 = vmatpush.msra.mxu0 0.0
        %679 = vmatpush.msra.mxu0 %v640
        %680 = vmatmul.f32.gmra.mxu0 %v636
        %v681 = vpop.f32.mrf.mxu0
        %v682 = vadd.f32 %v607, %v681
        %683 = vdwg.mxu0
        %684 = vmatpush.msra.mxu0 0.0
        %685 = vmatpush.msra.mxu0 0.0
        %686 = vmatpush.msra.mxu0 0.0
        %687 = vmatpush.msra.mxu0 0.0
        %688 = vmatpush.msra.mxu0 0.0
        %689 = vmatpush.msra.mxu0 0.0
        %690 = vmatpush.msra.mxu0 0.0
        %691 = vmatpush.msra.mxu0 0.0
        %692 = vmatpush.msra.mxu0 0.0
        %693 = vmatpush.msra.mxu0 0.0
        %694 = vmatpush.msra.mxu0 0.0
        %695 = vmatpush.msra.mxu0 0.0
        %696 = vmatpush.msra.mxu0 0.0
        %697 = vmatpush.msra.mxu0 0.0
        %698 = vmatpush.msra.mxu0 0.0
        %699 = vmatpush.msra.mxu0 %v642
        %700 = vmatmul.f32.gmra.mxu0 %v636
        %v701 = vpop.f32.mrf.mxu0
        %v702 = vadd.f32 %v627, %v701
        %703 = vdwg.mxu0
        %s704 = scalar_lea.vmem %s1, 16
        %v705 = vld [vmem:[%s704] sm:$0xff]
        %v706 = vld [vmem:[#allocation2] sm:$0xff]
        %v707 = vld [vmem:[#allocation2 + $0x8] sm:$0xf]
        %710 = vst [vmem:[#allocation1] ss:$2 sm:$0xff] %v706
        %s711 = scalar_lea.vmem [#allocation1], 16
        %712 = vst [vmem:[%s711] ss:$2 sm:$0xff] %v707
        %v713 = vld.sshfl [vmem:[#allocation1] sm:$0xff pattern:$0x75316420]
        %v714 = vld.sshfl [vmem:[#allocation1 + $0x8] sm:$0xff pattern:$0x75316420]
        %v715 = vld.sshfl [vmem:[#allocation1 + $0x10] sm:$0xff pattern:$0x75316420]
        %716 = vrot.lane.b32.xlu0 %v713, 126
        %v717 = vpop.permute.xlu0 %716
        %718 = vrot.lane.b32.xlu0 %v714, 126
        %v719 = vpop.permute.xlu0 %718
        %720 = vrot.lane.b32.xlu0 %v715, 126
        %v721 = vpop.permute.xlu0 %720
        %v722 = vsel %vm499, %v717, %v719
        %v723 = vsel %vm499, %v719, %v721
        %v725 = vsel %vm559, %v705, 0
        %v727 = vsel %vm520, %v722, 0
        %v729 = vsel %vm520, %v723, 0
        %v731 = vsel %vm520, %v721, 0
        %733 = vmatpush.msra.mxu0 0.0
        %734 = vmatpush.msra.mxu0 0.0
        %735 = vmatpush.msra.mxu0 0.0
        %736 = vmatpush.msra.mxu0 0.0
        %737 = vmatpush.msra.mxu0 0.0
        %738 = vmatpush.msra.mxu0 0.0
        %739 = vmatpush.msra.mxu0 0.0
        %740 = vmatpush.msra.mxu0 0.0
        %741 = vmatpush.msra.mxu0 0.0
        %742 = vmatpush.msra.mxu0 0.0
        %743 = vmatpush.msra.mxu0 0.0
        %744 = vmatpush.msra.mxu0 0.0
        %745 = vmatpush.msra.mxu0 0.0
        %746 = vmatpush.msra.mxu0 0.0
        %747 = vmatpush.msra.mxu0 0.0
        %748 = vmatpush.msra.mxu0 %v727
        %749 = vmatmul.f32.gmra.mxu0 %v725
        %v750 = vpop.f32.mrf.mxu0
        %v751 = vadd.f32 0.0, %v750
        %752 = vdwg.mxu0
        %753 = vmatpush.msra.mxu0 0.0
        %754 = vmatpush.msra.mxu0 0.0
        %755 = vmatpush.msra.mxu0 0.0
        %756 = vmatpush.msra.mxu0 0.0
        %757 = vmatpush.msra.mxu0 0.0
        %758 = vmatpush.msra.mxu0 0.0
        %759 = vmatpush.msra.mxu0 0.0
        %760 = vmatpush.msra.mxu0 0.0
        %761 = vmatpush.msra.mxu0 0.0
        %762 = vmatpush.msra.mxu0 0.0
        %763 = vmatpush.msra.mxu0 0.0
        %764 = vmatpush.msra.mxu0 0.0
        %765 = vmatpush.msra.mxu0 0.0
        %766 = vmatpush.msra.mxu0 0.0
        %767 = vmatpush.msra.mxu0 0.0
        %768 = vmatpush.msra.mxu0 %v729
        %769 = vmatmul.f32.gmra.mxu0 %v725
        %v770 = vpop.f32.mrf.mxu0
        %v771 = vadd.f32 0.0, %v770
        %772 = vdwg.mxu0
        %773 = vmatpush.msra.mxu0 0.0
        %774 = vmatpush.msra.mxu0 0.0
        %775 = vmatpush.msra.mxu0 0.0
        %776 = vmatpush.msra.mxu0 0.0
        %777 = vmatpush.msra.mxu0 0.0
        %778 = vmatpush.msra.mxu0 0.0
        %779 = vmatpush.msra.mxu0 0.0
        %780 = vmatpush.msra.mxu0 0.0
        %781 = vmatpush.msra.mxu0 0.0
        %782 = vmatpush.msra.mxu0 0.0
        %783 = vmatpush.msra.mxu0 0.0
        %784 = vmatpush.msra.mxu0 0.0
        %785 = vmatpush.msra.mxu0 0.0
        %786 = vmatpush.msra.mxu0 0.0
        %787 = vmatpush.msra.mxu0 0.0
        %788 = vmatpush.msra.mxu0 %v731
        %789 = vmatmul.f32.gmra.mxu0 %v725
        %v790 = vpop.f32.mrf.mxu0
        %v791 = vadd.f32 0.0, %v790
        %792 = vdwg.mxu0
        %v793 = vadd.f32 %v662, %v751
        %v794 = vadd.f32 %v682, %v771
        %v795 = vadd.f32 %v702, %v791
        %s796 = scalar_lea.vmem %s1, 24
        %v797 = vld [vmem:[%s796] sm:$0xff]
        %v798 = vld [vmem:[#allocation2] sm:$0xff]
        %v799 = vld [vmem:[#allocation2 + $0x8] sm:$0xf]
        %802 = vst [vmem:[#allocation1] ss:$2 sm:$0xff] %v798
        %s803 = scalar_lea.vmem [#allocation1], 16
        %804 = vst [vmem:[%s803] ss:$2 sm:$0xff] %v799
        %v805 = vld.sshfl [vmem:[#allocation1] sm:$0xff pattern:$0x75316420]
        %v806 = vld.sshfl [vmem:[#allocation1 + $0x8] sm:$0xff pattern:$0x75316420]
        %v807 = vld.sshfl [vmem:[#allocation1 + $0x10] sm:$0xff pattern:$0x75316420]
        %808 = vrot.lane.b32.xlu0 %v805, 110
        %v809 = vpop.permute.xlu0 %808
        %810 = vrot.lane.b32.xlu0 %v806, 110
        %v811 = vpop.permute.xlu0 %810
        %812 = vrot.lane.b32.xlu0 %v807, 110
        %v813 = vpop.permute.xlu0 %812
        %vm814 = vcmask 900096
        %v815 = vsel %vm814, %v809, %v811
        %v816 = vsel %vm814, %v811, %v813
        %v818 = vsel %vm559, %v797, 0
        %v820 = vsel %vm520, %v815, 0
        %v822 = vsel %vm520, %v816, 0
        %v824 = vsel %vm520, %v813, 0
        %826 = vmatpush.msra.mxu0 0.0
        %827 = vmatpush.msra.mxu0 0.0
        %828 = vmatpush.msra.mxu0 0.0
        %829 = vmatpush.msra.mxu0 0.0
        %830 = vmatpush.msra.mxu0 0.0
        %831 = vmatpush.msra.mxu0 0.0
        %832 = vmatpush.msra.mxu0 0.0
        %833 = vmatpush.msra.mxu0 0.0
        %834 = vmatpush.msra.mxu0 0.0
        %835 = vmatpush.msra.mxu0 0.0
        %836 = vmatpush.msra.mxu0 0.0
        %837 = vmatpush.msra.mxu0 0.0
        %838 = vmatpush.msra.mxu0 0.0
        %839 = vmatpush.msra.mxu0 0.0
        %840 = vmatpush.msra.mxu0 0.0
        %841 = vmatpush.msra.mxu0 %v820
        %842 = vmatmul.f32.gmra.mxu0 %v818
        %v843 = vpop.f32.mrf.mxu0
        %v844 = vadd.f32 0.0, %v843
        %845 = vdwg.mxu0
        %846 = vmatpush.msra.mxu0 0.0
        %847 = vmatpush.msra.mxu0 0.0
        %848 = vmatpush.msra.mxu0 0.0
        %849 = vmatpush.msra.mxu0 0.0
        %850 = vmatpush.msra.mxu0 0.0
        %851 = vmatpush.msra.mxu0 0.0
        %852 = vmatpush.msra.mxu0 0.0
        %853 = vmatpush.msra.mxu0 0.0
        %854 = vmatpush.msra.mxu0 0.0
        %855 = vmatpush.msra.mxu0 0.0
        %856 = vmatpush.msra.mxu0 0.0
        %857 = vmatpush.msra.mxu0 0.0
        %858 = vmatpush.msra.mxu0 0.0
        %859 = vmatpush.msra.mxu0 0.0
        %860 = vmatpush.msra.mxu0 0.0
        %861 = vmatpush.msra.mxu0 %v822
        %862 = vmatmul.f32.gmra.mxu0 %v818
        %v863 = vpop.f32.mrf.mxu0
        %v864 = vadd.f32 0.0, %v863
        %865 = vdwg.mxu0
        %866 = vmatpush.msra.mxu0 0.0
        %867 = vmatpush.msra.mxu0 0.0
        %868 = vmatpush.msra.mxu0 0.0
        %869 = vmatpush.msra.mxu0 0.0
        %870 = vmatpush.msra.mxu0 0.0
        %871 = vmatpush.msra.mxu0 0.0
        %872 = vmatpush.msra.mxu0 0.0
        %873 = vmatpush.msra.mxu0 0.0
        %874 = vmatpush.msra.mxu0 0.0
        %875 = vmatpush.msra.mxu0 0.0
        %876 = vmatpush.msra.mxu0 0.0
        %877 = vmatpush.msra.mxu0 0.0
        %878 = vmatpush.msra.mxu0 0.0
        %879 = vmatpush.msra.mxu0 0.0
        %880 = vmatpush.msra.mxu0 0.0
        %881 = vmatpush.msra.mxu0 %v824
        %882 = vmatmul.f32.gmra.mxu0 %v818
        %v883 = vpop.f32.mrf.mxu0
        %v884 = vadd.f32 0.0, %v883
        %885 = vdwg.mxu0
        %v886 = vadd.f32 %v793, %v844
        %v887 = vadd.f32 %v794, %v864
        %v888 = vadd.f32 %v795, %v884
        %s889 = scalar_lea.vmem %s1, 32
        %v890 = vld [vmem:[%s889] sm:$0xff]
        %v891 = vld [vmem:[#allocation2] sm:$0xff]
        %v892 = vld [vmem:[#allocation2 + $0x8] sm:$0xf]
        %895 = vst [vmem:[#allocation1] ss:$2 sm:$0xff] %v891
        %s896 = scalar_lea.vmem [#allocation1], 16
        %897 = vst [vmem:[%s896] ss:$2 sm:$0xff] %v892
        %v898 = vld.sshfl [vmem:[#allocation1] sm:$0xff pattern:$0x75316420]
        %v899 = vld.sshfl [vmem:[#allocation1 + $0x8] sm:$0xff pattern:$0x75316420]
        %v900 = vld.sshfl [vmem:[#allocation1 + $0x10] sm:$0xff pattern:$0x75316420]
        %901 = vrot.lane.b32.xlu0 %v898, 109
        %v902 = vpop.permute.xlu0 %901
        %903 = vrot.lane.b32.xlu0 %v899, 109
        %v904 = vpop.permute.xlu0 %903
        %905 = vrot.lane.b32.xlu0 %v900, 109
        %v906 = vpop.permute.xlu0 %905
        %vm907 = vcmask 891904
        %v908 = vsel %vm907, %v902, %v904
        %v909 = vsel %vm907, %v904, %v906
        %v911 = vsel %vm559, %v890, 0
        %v913 = vsel %vm520, %v908, 0
        %v915 = vsel %vm520, %v909, 0
        %v917 = vsel %vm520, %v906, 0
        %919 = vmatpush.msra.mxu0 0.0
        %920 = vmatpush.msra.mxu0 0.0
        %921 = vmatpush.msra.mxu0 0.0
        %922 = vmatpush.msra.mxu0 0.0
        %923 = vmatpush.msra.mxu0 0.0
        %924 = vmatpush.msra.mxu0 0.0
        %925 = vmatpush.msra.mxu0 0.0
        %926 = vmatpush.msra.mxu0 0.0
        %927 = vmatpush.msra.mxu0 0.0
        %928 = vmatpush.msra.mxu0 0.0
        %929 = vmatpush.msra.mxu0 0.0
        %930 = vmatpush.msra.mxu0 0.0
        %931 = vmatpush.msra.mxu0 0.0
        %932 = vmatpush.msra.mxu0 0.0
        %933 = vmatpush.msra.mxu0 0.0
        %934 = vmatpush.msra.mxu0 %v913
        %935 = vmatmul.f32.gmra.mxu0 %v911
        %v936 = vpop.f32.mrf.mxu0
        %v937 = vadd.f32 0.0, %v936
        %938 = vdwg.mxu0
        %939 = vmatpush.msra.mxu0 0.0
        %940 = vmatpush.msra.mxu0 0.0
        %941 = vmatpush.msra.mxu0 0.0
        %942 = vmatpush.msra.mxu0 0.0
        %943 = vmatpush.msra.mxu0 0.0
        %944 = vmatpush.msra.mxu0 0.0
        %945 = vmatpush.msra.mxu0 0.0
        %946 = vmatpush.msra.mxu0 0.0
        %947 = vmatpush.msra.mxu0 0.0
        %948 = vmatpush.msra.mxu0 0.0
        %949 = vmatpush.msra.mxu0 0.0
        %950 = vmatpush.msra.mxu0 0.0
        %951 = vmatpush.msra.mxu0 0.0
        %952 = vmatpush.msra.mxu0 0.0
        %953 = vmatpush.msra.mxu0 0.0
        %954 = vmatpush.msra.mxu0 %v915
        %955 = vmatmul.f32.gmra.mxu0 %v911
        %v956 = vpop.f32.mrf.mxu0
        %v957 = vadd.f32 0.0, %v956
        %958 = vdwg.mxu0
        %959 = vmatpush.msra.mxu0 0.0
        %960 = vmatpush.msra.mxu0 0.0
        %961 = vmatpush.msra.mxu0 0.0
        %962 = vmatpush.msra.mxu0 0.0
        %963 = vmatpush.msra.mxu0 0.0
        %964 = vmatpush.msra.mxu0 0.0
        %965 = vmatpush.msra.mxu0 0.0
        %966 = vmatpush.msra.mxu0 0.0
        %967 = vmatpush.msra.mxu0 0.0
        %968 = vmatpush.msra.mxu0 0.0
        %969 = vmatpush.msra.mxu0 0.0
        %970 = vmatpush.msra.mxu0 0.0
        %971 = vmatpush.msra.mxu0 0.0
        %972 = vmatpush.msra.mxu0 0.0
        %973 = vmatpush.msra.mxu0 0.0
        %974 = vmatpush.msra.mxu0 %v917
        %975 = vmatmul.f32.gmra.mxu0 %v911
        %v976 = vpop.f32.mrf.mxu0
        %v977 = vadd.f32 0.0, %v976
        %978 = vdwg.mxu0
        %v979 = vadd.f32 %v886, %v937
        %v980 = vadd.f32 %v887, %v957
        %v981 = vadd.f32 %v888, %v977
        %s982 = scalar_lea.vmem %s1, 40
        %v983 = vld [vmem:[%s982] sm:$0xff]
        %v984 = vld [vmem:[#allocation2] sm:$0xff]
        %v985 = vld [vmem:[#allocation2 + $0x8] sm:$0xf]
        %988 = vst [vmem:[#allocation1] ss:$2 sm:$0xff] %v984
        %s989 = scalar_lea.vmem [#allocation1], 16
        %990 = vst [vmem:[%s989] ss:$2 sm:$0xff] %v985
        %v991 = vld.sshfl [vmem:[#allocation1] sm:$0xff pattern:$0x75316420]
        %v992 = vld.sshfl [vmem:[#allocation1 + $0x8] sm:$0xff pattern:$0x75316420]
        %v993 = vld.sshfl [vmem:[#allocation1 + $0x10] sm:$0xff pattern:$0x75316420]
        %994 = vrot.lane.b32.xlu0 %v991, 108
        %v995 = vpop.permute.xlu0 %994
        %996 = vrot.lane.b32.xlu0 %v992, 108
        %v997 = vpop.permute.xlu0 %996
        %998 = vrot.lane.b32.xlu0 %v993, 108
        %v999 = vpop.permute.xlu0 %998
        %v1000 = vsel %vm497, %v995, %v997
        %v1001 = vsel %vm497, %v997, %v999
        %v1003 = vsel %vm559, %v983, 0
        %v1005 = vsel %vm520, %v1000, 0
        %v1007 = vsel %vm520, %v1001, 0
        %v1009 = vsel %vm520, %v999, 0
        %1011 = vmatpush.msra.mxu0 0.0
        %1012 = vmatpush.msra.mxu0 0.0
        %1013 = vmatpush.msra.mxu0 0.0
        %1014 = vmatpush.msra.mxu0 0.0
        %1015 = vmatpush.msra.mxu0 0.0
        %1016 = vmatpush.msra.mxu0 0.0
        %1017 = vmatpush.msra.mxu0 0.0
        %1018 = vmatpush.msra.mxu0 0.0
        %1019 = vmatpush.msra.mxu0 0.0
        %1020 = vmatpush.msra.mxu0 0.0
        %1021 = vmatpush.msra.mxu0 0.0
        %1022 = vmatpush.msra.mxu0 0.0
        %1023 = vmatpush.msra.mxu0 0.0
        %1024 = vmatpush.msra.mxu0 0.0
        %1025 = vmatpush.msra.mxu0 0.0
        %1026 = vmatpush.msra.mxu0 %v1005
        %1027 = vmatmul.f32.gmra.mxu0 %v1003
        %v1028 = vpop.f32.mrf.mxu0
        %v1029 = vadd.f32 0.0, %v1028
        %1030 = vdwg.mxu0
        %1031 = vmatpush.msra.mxu0 0.0
        %1032 = vmatpush.msra.mxu0 0.0
        %1033 = vmatpush.msra.mxu0 0.0
        %1034 = vmatpush.msra.mxu0 0.0
        %1035 = vmatpush.msra.mxu0 0.0
        %1036 = vmatpush.msra.mxu0 0.0
        %1037 = vmatpush.msra.mxu0 0.0
        %1038 = vmatpush.msra.mxu0 0.0
        %1039 = vmatpush.msra.mxu0 0.0
        %1040 = vmatpush.msra.mxu0 0.0
        %1041 = vmatpush.msra.mxu0 0.0
        %1042 = vmatpush.msra.mxu0 0.0
        %1043 = vmatpush.msra.mxu0 0.0
        %1044 = vmatpush.msra.mxu0 0.0
        %1045 = vmatpush.msra.mxu0 0.0
        %1046 = vmatpush.msra.mxu0 %v1007
        %1047 = vmatmul.f32.gmra.mxu0 %v1003
        %v1048 = vpop.f32.mrf.mxu0
        %v1049 = vadd.f32 0.0, %v1048
        %1050 = vdwg.mxu0
        %1051 = vmatpush.msra.mxu0 0.0
        %1052 = vmatpush.msra.mxu0 0.0
        %1053 = vmatpush.msra.mxu0 0.0
        %1054 = vmatpush.msra.mxu0 0.0
        %1055 = vmatpush.msra.mxu0 0.0
        %1056 = vmatpush.msra.mxu0 0.0
        %1057 = vmatpush.msra.mxu0 0.0
        %1058 = vmatpush.msra.mxu0 0.0
        %1059 = vmatpush.msra.mxu0 0.0
        %1060 = vmatpush.msra.mxu0 0.0
        %1061 = vmatpush.msra.mxu0 0.0
        %1062 = vmatpush.msra.mxu0 0.0
        %1063 = vmatpush.msra.mxu0 0.0
        %1064 = vmatpush.msra.mxu0 0.0
        %1065 = vmatpush.msra.mxu0 0.0
        %1066 = vmatpush.msra.mxu0 %v1009
        %1067 = vmatmul.f32.gmra.mxu0 %v1003
        %v1068 = vpop.f32.mrf.mxu0
        %v1069 = vadd.f32 0.0, %v1068
        %1070 = vdwg.mxu0
        %v1071 = vadd.f32 %v979, %v1029
        %v1072 = vadd.f32 %v980, %v1049
        %v1073 = vadd.f32 %v981, %v1069
        %s1074 = scalar_lea.vmem %s1, 48
        %v1075 = vld [vmem:[%s1074] sm:$0xff]
        %v1076 = vld [vmem:[#allocation2] sm:$0xff]
        %v1077 = vld [vmem:[#allocation2 + $0x8] sm:$0xf]
        %1080 = vst [vmem:[#allocation1] ss:$2 sm:$0xff] %v1076
        %s1081 = scalar_lea.vmem [#allocation1], 16
        %1082 = vst [vmem:[%s1081] ss:$2 sm:$0xff] %v1077
        %v1083 = vld.sshfl [vmem:[#allocation1] sm:$0xff pattern:$0x75316420]
        %v1084 = vld.sshfl [vmem:[#allocation1 + $0x8] sm:$0xff pattern:$0x75316420]
        %v1085 = vld.sshfl [vmem:[#allocation1 + $0x10] sm:$0xff pattern:$0x75316420]
        %1086 = vrot.lane.b32.xlu0 %v1083, 92
        %v1087 = vpop.permute.xlu0 %1086
        %1088 = vrot.lane.b32.xlu0 %v1084, 92
        %v1089 = vpop.permute.xlu0 %1088
        %1090 = vrot.lane.b32.xlu0 %v1085, 92
        %v1091 = vpop.permute.xlu0 %1090
        %vm1092 = vcmask 752640
        %v1093 = vsel %vm1092, %v1087, %v1089
        %v1094 = vsel %vm1092, %v1089, %v1091
        %v1096 = vsel %vm559, %v1075, 0
        %v1098 = vsel %vm520, %v1093, 0
        %v1100 = vsel %vm520, %v1094, 0
        %v1102 = vsel %vm520, %v1091, 0
        %1104 = vmatpush.msra.mxu0 0.0
        %1105 = vmatpush.msra.mxu0 0.0
        %1106 = vmatpush.msra.mxu0 0.0
        %1107 = vmatpush.msra.mxu0 0.0
        %1108 = vmatpush.msra.mxu0 0.0
        %1109 = vmatpush.msra.mxu0 0.0
        %1110 = vmatpush.msra.mxu0 0.0
        %1111 = vmatpush.msra.mxu0 0.0
        %1112 = vmatpush.msra.mxu0 0.0
        %1113 = vmatpush.msra.mxu0 0.0
        %1114 = vmatpush.msra.mxu0 0.0
        %1115 = vmatpush.msra.mxu0 0.0
        %1116 = vmatpush.msra.mxu0 0.0
        %1117 = vmatpush.msra.mxu0 0.0
        %1118 = vmatpush.msra.mxu0 0.0
        %1119 = vmatpush.msra.mxu0 %v1098
        %1120 = vmatmul.f32.gmra.mxu0 %v1096
        %v1121 = vpop.f32.mrf.mxu0
        %v1122 = vadd.f32 0.0, %v1121
        %1123 = vdwg.mxu0
        %1124 = vmatpush.msra.mxu0 0.0
        %1125 = vmatpush.msra.mxu0 0.0
        %1126 = vmatpush.msra.mxu0 0.0
        %1127 = vmatpush.msra.mxu0 0.0
        %1128 = vmatpush.msra.mxu0 0.0
        %1129 = vmatpush.msra.mxu0 0.0
        %1130 = vmatpush.msra.mxu0 0.0
        %1131 = vmatpush.msra.mxu0 0.0
        %1132 = vmatpush.msra.mxu0 0.0
        %1133 = vmatpush.msra.mxu0 0.0
        %1134 = vmatpush.msra.mxu0 0.0
        %1135 = vmatpush.msra.mxu0 0.0
        %1136 = vmatpush.msra.mxu0 0.0
        %1137 = vmatpush.msra.mxu0 0.0
        %1138 = vmatpush.msra.mxu0 0.0
        %1139 = vmatpush.msra.mxu0 %v1100
        %1140 = vmatmul.f32.gmra.mxu0 %v1096
        %v1141 = vpop.f32.mrf.mxu0
        %v1142 = vadd.f32 0.0, %v1141
        %1143 = vdwg.mxu0
        %1144 = vmatpush.msra.mxu0 0.0
        %1145 = vmatpush.msra.mxu0 0.0
        %1146 = vmatpush.msra.mxu0 0.0
        %1147 = vmatpush.msra.mxu0 0.0
        %1148 = vmatpush.msra.mxu0 0.0
        %1149 = vmatpush.msra.mxu0 0.0
        %1150 = vmatpush.msra.mxu0 0.0
        %1151 = vmatpush.msra.mxu0 0.0
        %1152 = vmatpush.msra.mxu0 0.0
        %1153 = vmatpush.msra.mxu0 0.0
        %1154 = vmatpush.msra.mxu0 0.0
        %1155 = vmatpush.msra.mxu0 0.0
        %1156 = vmatpush.msra.mxu0 0.0
        %1157 = vmatpush.msra.mxu0 0.0
        %1158 = vmatpush.msra.mxu0 0.0
        %1159 = vmatpush.msra.mxu0 %v1102
        %1160 = vmatmul.f32.gmra.mxu0 %v1096
        %v1161 = vpop.f32.mrf.mxu0
        %v1162 = vadd.f32 0.0, %v1161
        %1163 = vdwg.mxu0
        %v1164 = vadd.f32 %v1071, %v1122
        %v1165 = vadd.f32 %v1072, %v1142
        %v1166 = vadd.f32 %v1073, %v1162
        %s1167 = scalar_lea.vmem %s1, 56
        %v1168 = vld [vmem:[%s1167] sm:$0xff]
        %v1169 = vld [vmem:[#allocation2] sm:$0xff]
        %v1170 = vld [vmem:[#allocation2 + $0x8] sm:$0xf]
        %1173 = vst [vmem:[#allocation1] ss:$2 sm:$0xff] %v1169
        %s1174 = scalar_lea.vmem [#allocation1], 16
        %1175 = vst [vmem:[%s1174] ss:$2 sm:$0xff] %v1170
        %v1176 = vld.sshfl [vmem:[#allocation1] sm:$0xff pattern:$0x75316420]
        %v1177 = vld.sshfl [vmem:[#allocation1 + $0x8] sm:$0xff pattern:$0x75316420]
        %v1178 = vld.sshfl [vmem:[#allocation1 + $0x10] sm:$0xff pattern:$0x75316420]
        %1179 = vrot.lane.b32.xlu0 %v1176, 91
        %v1180 = vpop.permute.xlu0 %1179
        %1181 = vrot.lane.b32.xlu0 %v1177, 91
        %v1182 = vpop.permute.xlu0 %1181
        %1183 = vrot.lane.b32.xlu0 %v1178, 91
        %v1184 = vpop.permute.xlu0 %1183
        %vm1185 = vcmask 744448
        %v1186 = vsel %vm1185, %v1180, %v1182
        %v1187 = vsel %vm1185, %v1182, %v1184
        %v1189 = vsel %vm559, %v1168, 0
        %v1191 = vsel %vm520, %v1186, 0
        %v1193 = vsel %vm520, %v1187, 0
        %v1195 = vsel %vm520, %v1184, 0
        %1197 = vmatpush.msra.mxu0 0.0
        %1198 = vmatpush.msra.mxu0 0.0
        %1199 = vmatpush.msra.mxu0 0.0
        %1200 = vmatpush.msra.mxu0 0.0
        %1201 = vmatpush.msra.mxu0 0.0
        %1202 = vmatpush.msra.mxu0 0.0
        %1203 = vmatpush.msra.mxu0 0.0
        %1204 = vmatpush.msra.mxu0 0.0
        %1205 = vmatpush.msra.mxu0 0.0
        %1206 = vmatpush.msra.mxu0 0.0
        %1207 = vmatpush.msra.mxu0 0.0
        %1208 = vmatpush.msra.mxu0 0.0
        %1209 = vmatpush.msra.mxu0 0.0
        %1210 = vmatpush.msra.mxu0 0.0
        %1211 = vmatpush.msra.mxu0 0.0
        %1212 = vmatpush.msra.mxu0 %v1191
        %1213 = vmatmul.f32.gmra.mxu0 %v1189
        %v1214 = vpop.f32.mrf.mxu0
        %v1215 = vadd.f32 0.0, %v1214
        %1216 = vdwg.mxu0
        %1217 = vmatpush.msra.mxu0 0.0
        %1218 = vmatpush.msra.mxu0 0.0
        %1219 = vmatpush.msra.mxu0 0.0
        %1220 = vmatpush.msra.mxu0 0.0
        %1221 = vmatpush.msra.mxu0 0.0
        %1222 = vmatpush.msra.mxu0 0.0
        %1223 = vmatpush.msra.mxu0 0.0
        %1224 = vmatpush.msra.mxu0 0.0
        %1225 = vmatpush.msra.mxu0 0.0
        %1226 = vmatpush.msra.mxu0 0.0
        %1227 = vmatpush.msra.mxu0 0.0
        %1228 = vmatpush.msra.mxu0 0.0
        %1229 = vmatpush.msra.mxu0 0.0
        %1230 = vmatpush.msra.mxu0 0.0
        %1231 = vmatpush.msra.mxu0 0.0
        %1232 = vmatpush.msra.mxu0 %v1193
        %1233 = vmatmul.f32.gmra.mxu0 %v1189
        %v1234 = vpop.f32.mrf.mxu0
        %v1235 = vadd.f32 0.0, %v1234
        %1236 = vdwg.mxu0
        %1237 = vmatpush.msra.mxu0 0.0
        %1238 = vmatpush.msra.mxu0 0.0
        %1239 = vmatpush.msra.mxu0 0.0
        %1240 = vmatpush.msra.mxu0 0.0
        %1241 = vmatpush.msra.mxu0 0.0
        %1242 = vmatpush.msra.mxu0 0.0
        %1243 = vmatpush.msra.mxu0 0.0
        %1244 = vmatpush.msra.mxu0 0.0
        %1245 = vmatpush.msra.mxu0 0.0
        %1246 = vmatpush.msra.mxu0 0.0
        %1247 = vmatpush.msra.mxu0 0.0
        %1248 = vmatpush.msra.mxu0 0.0
        %1249 = vmatpush.msra.mxu0 0.0
        %1250 = vmatpush.msra.mxu0 0.0
        %1251 = vmatpush.msra.mxu0 0.0
        %1252 = vmatpush.msra.mxu0 %v1195
        %1253 = vmatmul.f32.gmra.mxu0 %v1189
        %v1254 = vpop.f32.mrf.mxu0
        %v1255 = vadd.f32 0.0, %v1254
        %1256 = vdwg.mxu0
        %v1257 = vadd.f32 %v1164, %v1215
        %v1258 = vadd.f32 %v1165, %v1235
        %v1259 = vadd.f32 %v1166, %v1255
        %s1260 = scalar_lea.vmem %s1, 64
        %v1261 = vld [vmem:[%s1260] sm:$0xff]
        %v1262 = vld [vmem:[#allocation2] sm:$0xff]
        %v1263 = vld [vmem:[#allocation2 + $0x8] sm:$0xf]
        %1266 = vst [vmem:[#allocation1] ss:$2 sm:$0xff] %v1262
        %s1267 = scalar_lea.vmem [#allocation1], 16
        %1268 = vst [vmem:[%s1267] ss:$2 sm:$0xff] %v1263
        %v1269 = vld.sshfl [vmem:[#allocation1] sm:$0xff pattern:$0x75316420]
        %v1270 = vld.sshfl [vmem:[#allocation1 + $0x8] sm:$0xff pattern:$0x75316420]
        %v1271 = vld.sshfl [vmem:[#allocation1 + $0x10] sm:$0xff pattern:$0x75316420]
        %1272 = vrot.lane.b32.xlu0 %v1269, 90
        %v1273 = vpop.permute.xlu0 %1272
        %1274 = vrot.lane.b32.xlu0 %v1270, 90
        %v1275 = vpop.permute.xlu0 %1274
        %1276 = vrot.lane.b32.xlu0 %v1271, 90
        %v1277 = vpop.permute.xlu0 %1276
        %v1278 = vsel %vm495, %v1273, %v1275
        %v1279 = vsel %vm495, %v1275, %v1277
        %v1281 = vsel %vm559, %v1261, 0
        %v1283 = vsel %vm520, %v1278, 0
        %v1285 = vsel %vm520, %v1279, 0
        %v1287 = vsel %vm520, %v1277, 0
        %1289 = vmatpush.msra.mxu0 0.0
        %1290 = vmatpush.msra.mxu0 0.0
        %1291 = vmatpush.msra.mxu0 0.0
        %1292 = vmatpush.msra.mxu0 0.0
        %1293 = vmatpush.msra.mxu0 0.0
        %1294 = vmatpush.msra.mxu0 0.0
        %1295 = vmatpush.msra.mxu0 0.0
        %1296 = vmatpush.msra.mxu0 0.0
        %1297 = vmatpush.msra.mxu0 0.0
        %1298 = vmatpush.msra.mxu0 0.0
        %1299 = vmatpush.msra.mxu0 0.0
        %1300 = vmatpush.msra.mxu0 0.0
        %1301 = vmatpush.msra.mxu0 0.0
        %1302 = vmatpush.msra.mxu0 0.0
        %1303 = vmatpush.msra.mxu0 0.0
        %1304 = vmatpush.msra.mxu0 %v1283
        %1305 = vmatmul.f32.gmra.mxu0 %v1281
        %v1306 = vpop.f32.mrf.mxu0
        %v1307 = vadd.f32 0.0, %v1306
        %1308 = vdwg.mxu0
        %1309 = vmatpush.msra.mxu0 0.0
        %1310 = vmatpush.msra.mxu0 0.0
        %1311 = vmatpush.msra.mxu0 0.0
        %1312 = vmatpush.msra.mxu0 0.0
        %1313 = vmatpush.msra.mxu0 0.0
        %1314 = vmatpush.msra.mxu0 0.0
        %1315 = vmatpush.msra.mxu0 0.0
        %1316 = vmatpush.msra.mxu0 0.0
        %1317 = vmatpush.msra.mxu0 0.0
        %1318 = vmatpush.msra.mxu0 0.0
        %1319 = vmatpush.msra.mxu0 0.0
        %1320 = vmatpush.msra.mxu0 0.0
        %1321 = vmatpush.msra.mxu0 0.0
        %1322 = vmatpush.msra.mxu0 0.0
        %1323 = vmatpush.msra.mxu0 0.0
        %1324 = vmatpush.msra.mxu0 %v1285
        %1325 = vmatmul.f32.gmra.mxu0 %v1281
        %v1326 = vpop.f32.mrf.mxu0
        %v1327 = vadd.f32 0.0, %v1326
        %1328 = vdwg.mxu0
        %1329 = vmatpush.msra.mxu0 0.0
        %1330 = vmatpush.msra.mxu0 0.0
        %1331 = vmatpush.msra.mxu0 0.0
        %1332 = vmatpush.msra.mxu0 0.0
        %1333 = vmatpush.msra.mxu0 0.0
        %1334 = vmatpush.msra.mxu0 0.0
        %1335 = vmatpush.msra.mxu0 0.0
        %1336 = vmatpush.msra.mxu0 0.0
        %1337 = vmatpush.msra.mxu0 0.0
        %1338 = vmatpush.msra.mxu0 0.0
        %1339 = vmatpush.msra.mxu0 0.0
        %1340 = vmatpush.msra.mxu0 0.0
        %1341 = vmatpush.msra.mxu0 0.0
        %1342 = vmatpush.msra.mxu0 0.0
        %1343 = vmatpush.msra.mxu0 0.0
        %1344 = vmatpush.msra.mxu0 %v1287
        %1345 = vmatmul.f32.gmra.mxu0 %v1281
        %v1346 = vpop.f32.mrf.mxu0
        %v1347 = vadd.f32 0.0, %v1346
        %1348 = vdwg.mxu0
        %v1349 = vadd.f32 %v1257, %v1307
        %v1350 = vadd.f32 %v1258, %v1327
        %v1351 = vadd.f32 %v1259, %v1347
        %v1352 = vld [vmem:[%s2] sm:$0xff]
        %1354 = vset.pattern.permute.xlu0 0
        %1355 = vperm.xlu0 %1354, %v1352
        %v1356 = vpop.permute.xlu0 %1355
        %v1358 = vadd.f32 %v1349, %v1356
        %v1359 = vadd.f32 %v1350, %v1356
        %v1360 = vadd.f32 %v1351, %v1356
        %v1361 = vld [vmem:[%s3] sm:$0x7]
        %v1363 = vperm.slane %v1361, 0
        %v1364 = vperm.slane %v1361, 1
        %v1365 = vperm.slane %v1361, 2
        %v1369 = vmul.f32 %v1358, %v1363
        %v1370 = vmul.f32 %v1359, %v1364
        %v1371 = vmul.f32 %v1360, %v1365
        %v1372 = vpack.c.bf16 %v1370, %v1369
        %v1373 = vpack.c.bf16 %v1371, %v1371
        %1374 = vst [vmem:[%s272] sm:$0xff] %v1372
        %vm1375 = vcmask 257024
        %1376 = vst.msk [vmem:[%s272 + $0x8] sm:$0xf] %vm1375, %v1373
        %v1377 = vadd.f32 %v1369, %v1370
        %vm1378 = vcmask 261120
        %v1379 = vsel %vm1378, %v1371, 0.0
        %v1380 = vadd.f32 %v1377, %v1379
        %1381 = vadd.xlane.f32.xlu0 %v1380
        %v1382 = vpop.xlane.xlu0 %1381
        %vm1383 = vcmask 7168
        %1384 = vst.msk [vmem:[%s288] sm:$0xff] %vm1383, %v1382
        %v1385 = vmul.f32 %v1369, %v1369
        %v1386 = vmul.f32 %v1370, %v1370
        %v1387 = vmul.f32 %v1371, %v1371
        %v1388 = vadd.f32 %v1385, %v1386
        %v1389 = vsel %vm1378, %v1387, 0.0
        %v1390 = vadd.f32 %v1388, %v1389
        %1391 = vadd.xlane.f32.xlu0 %v1390
        %v1392 = vpop.xlane.xlu0 %1391
        %1393 = vst.msk [vmem:[%s292] sm:$0xff] %vm1383, %v1392
        %s1394 = sand.u32 %s121, 1
        %s1395 = scalar_lea.sflag [#allocation5], %s1394
        %s1396 = sand.u32 %s121, 1
        %s1397 = smul.addr %s1396, 12
        %s1398 = scalar_lea.vmem [#allocation6], %s1397
        %p1399 = scmp.lt.s32.totalorder %s24, 1
        %s1400 = scalar_select %p1399, %s24, 1
        %s1401 = smul.addr %s1400, 8
        %s1402 = scalar_lea.vmem %s5, %s1401
        %p1403 = scmp.lt.s32.totalorder %s24, 1
        %s1404 = scalar_select %p1403, %s24, 1
        %s1405 = smul.addr %s1404, 8
        %s1406 = scalar_lea.vmem %s6, %s1405
        // Predicated region
        $region41: #{tpu_custom_call.1} parent=35 // pred_check
          %p1407 = pneg %p131
        $region42: #{tpu_custom_call.1} parent=35 // pred_check_branch
          %1409 = sbr.rel (%p1407) target = $region44
        $region43: #{tpu_custom_call.1} parent=35 // pred_region
          %1411 = vsyncadd %s1395, 0
          %s1412 = smul.addr %s24, 3
          %s1413 = smul.addr %s1412, 4
          %s1414 = scalar_lea.hbm %s4, %s1413
          %s1416 = sshll.u32 %s1398, 4
          %s1417 = int_to_ptr.vmem [resolvable:$true] %s1416
          %s1418 = sshll.u32 %s1414, 4
          %s1419 = int_to_ptr.hbm [resolvable:$true] %s1418
          %1421 = dma.vmem_to_hbm [thread:$0]  %s1417, 192, %s1419, %s1395
        $region44: #{tpu_custom_call.1} parent=35 // pred_fallthru
          _
        // Predicated region
        $region45: #{tpu_custom_call.1} parent=35 // pred_check
          %p1422 = pneg %p157
        $region46: #{tpu_custom_call.1} parent=35 // pred_check_branch
          %1424 = sbr.rel (%p1422) target = $region48
        $region47: #{tpu_custom_call.1} parent=35 // pred_region
          _
        $region48: #{tpu_custom_call.1} parent=35 // pred_fallthru
          _
        // Predicated region
        $region49: #{tpu_custom_call.1} parent=35 // pred_check
          %p1425 = pneg %p183
        $region50: #{tpu_custom_call.1} parent=35 // pred_check_branch
          %1427 = sbr.rel (%p1425) target = $region52
        $region51: #{tpu_custom_call.1} parent=35 // pred_region
          _
        $region52: #{tpu_custom_call.1} parent=35 // pred_fallthru
          _
      $region36: #{tpu_custom_call.1} parent=5 // pred_fallthru
        _
      %p1428 = scmp.le.s32.totalorder 2, %s19
      // Predicated region
      $region53: #{tpu_custom_call.1} parent=5 // pred_check
        %p1429 = pneg %p1428
      $region54: #{tpu_custom_call.1} parent=5 // pred_check_branch
        %1431 = sbr.rel (%p1429) target = $region56
      $region55: #{tpu_custom_call.1} parent=5 // pred_region
        %s1432 = ssub.s32 %s19, 2
        // Predicated region
        $region57: #{tpu_custom_call.1} parent=55 // pred_check
          %p1433 = pneg %p137
        $region58: #{tpu_custom_call.1} parent=55 // pred_check_branch
          %1435 = sbr.rel (%p1433) target = $region60
        $region59: #{tpu_custom_call.1} parent=55 // pred_region
          %s1436 = sand.u32 %s122, 1
          %s1437 = scalar_lea.sflag [#allocation5], %s1436
          %s1438 = sand.u32 %s122, 1
          %s1439 = smul.addr %s1438, 12
          %s1440 = scalar_lea.vmem [#allocation6], %s1439
          %1442 = dma.done %s1437, 192
        $region60: #{tpu_custom_call.1} parent=55 // pred_fallthru
          _
        // Predicated region
        $region61: #{tpu_custom_call.1} parent=55 // pred_check
          %p1443 = pneg %p163
        $region62: #{tpu_custom_call.1} parent=55 // pred_check_branch
          %1445 = sbr.rel (%p1443) target = $region64
        $region63: #{tpu_custom_call.1} parent=55 // pred_region
          %p1446 = scmp.lt.s32.totalorder %s25, 1
          %s1447 = scalar_select %p1446, %s25, 1
          %s1448 = smul.addr %s1447, 8
          %s1449 = scalar_lea.vmem %s5, %s1448
        $region64: #{tpu_custom_call.1} parent=55 // pred_fallthru
          _
        // Predicated region
        $region65: #{tpu_custom_call.1} parent=55 // pred_check
          %p1450 = pneg %p189
        $region66: #{tpu_custom_call.1} parent=55 // pred_check_branch
          %1452 = sbr.rel (%p1450) target = $region68
        $region67: #{tpu_custom_call.1} parent=55 // pred_region
          %p1453 = scmp.lt.s32.totalorder %s25, 1
          %s1454 = scalar_select %p1453, %s25, 1
          %s1455 = smul.addr %s1454, 8
          %s1456 = scalar_lea.vmem %s6, %s1455
        $region68: #{tpu_custom_call.1} parent=55 // pred_fallthru
          _
      $region56: #{tpu_custom_call.1} parent=5 // pred_fallthru
        _
    $region6: #{tpu_custom_call.1} parent=1 // loop_footer
      %s23 = sadd.s32 1, %s19
    $region7: #{tpu_custom_call.1} parent=1 // loop_footer_branch
      %18 = sbr.rel target = $region3
    $region8: #{tpu_custom_call.1} parent=1 // loop_exit
      _
    %1457 = vsyncpa [#allocation4], 1
    %s1458 = scalar_lea.sflag [#allocation4], 1
    %1459 = vsyncpa %s1458, 1
    %1460 = vsyncpa [#allocation5], 1
    %s1461 = scalar_lea.sflag [#allocation5], 1
    %1462 = vsyncpa %s1461, 1

</llo_original>
